<compile_context>
chip_gen: v5e
topology: v5e:2x2
jax: 0.10.0
libtpu: 0.0.40
codegen_flags: <defaults>
</compile_context>

<pallas_src>
import math

import jax
import jax.numpy as jnp
import numpy as np
from jax.experimental import pallas as pl
from jax.experimental.pallas import tpu as pltpu  # noqa: F401  (TPU backend / compiler params)

# ----------------------- small config consistent with the module -----------------------
L = 2             # encoder layers
H = W = 16        # image size
P = 8             # patch size
C = 3             # channels
HEADS = 4
DIM = 64          # embedding dim D (dim % heads == 0)
N = (H * W) // (P * P)      # number of patches = 4
SEQ = N + 1                 # +1 cls token = 5
DH = DIM // HEADS           # per-head dim = 16
CLASSES = 10
PATCH_FEAT = P * P * C      # 192
LN_EPS = 1e-5
INV_SQRT_DH = 1.0 / math.sqrt(DH)
F32 = jnp.float32


# ------------------------------------ in-kernel math -------------------------------------
def _erf(x):
    # erf via Abramowitz & Stegun 7.1.26 (max abs err ~1.5e-7); built only from
    # exp/abs/where/mul/add which all lower on the TPU VPU/EUP.
    # (lax.erf has no guaranteed Mosaic lowering, so keep the polynomial; cost is negligible here.)
    a1, a2, a3, a4, a5 = (0.254829592, -0.284496736, 1.421413741,
                          -1.453152027, 1.061405429)
    p = 0.3275911
    s = jnp.where(x < 0.0, -1.0, 1.0)
    ax = jnp.abs(x)
    t = 1.0 / (1.0 + p * ax)
    poly = ((((a5 * t + a4) * t + a3) * t + a2) * t + a1) * t
    return s * (1.0 - poly * jnp.exp(-ax * ax))


def _gelu_exact(x):
    # torch.nn.GELU() default (approximate='none'): 0.5 * x * (1 + erf(x / sqrt(2)))
    return 0.5 * x * (1.0 + _erf(x * (1.0 / math.sqrt(2.0))))


def _full_layernorm(x, g, b):
    # nn.LayerNorm(normalized_shape=(SEQ, DIM)): ONE mean/var over the whole tensor.
    inv_size = 1.0 / float(SEQ * DIM)
    mean = jnp.sum(jnp.sum(x, axis=1, keepdims=True), axis=0, keepdims=True) * inv_size
    d = x - mean
    var = jnp.sum(jnp.sum(d * d, axis=1, keepdims=True), axis=0, keepdims=True) * inv_size
    return d * jax.lax.rsqrt(var + LN_EPS) * g + b


def _softmax_rows(s, approx_recip):
    # softmax over the last dim (== F.softmax on a 2-D tensor); max-subtraction is a
    # numerically-equivalent stabilization.
    s = s - jnp.max(s, axis=-1, keepdims=True)
    e = jnp.exp(s)
    denom = jnp.sum(e, axis=-1, keepdims=True)
    if approx_recip:
        return e * pl.reciprocal(denom, approx=True)   # EUP reciprocal, otherwise-idle slot
    return e / denom


# ----------------------------------- fused ViT kernel ------------------------------------
def _vit_kernel(patches_ref, pw_ref, pb_ref, cls_ref, pos_ref,
                ln1g_ref, ln1b_ref, wqkv_ref, bqkv_ref, wp_ref, bp_ref,
                ln2g_ref, ln2b_ref, w1_ref, b1_ref, w2_ref, b2_ref,
                lng_ref, lnb_ref, hw_ref, hb_ref, out_ref):
    # ---- patch embedding on the zero-padded (SEQ, PATCH_FEAT) patch matrix ----
    emb = jnp.dot(patches_ref[...], pw_ref[...], preferred_element_type=F32) + pb_ref[...]
    # Row 0 of the sequence is the cls token (replaces the dummy zero-patch row),
    # rows 1..N are the patch embeddings; then add the positional embedding.
    row_id = jax.lax.broadcasted_iota(jnp.int32, (SEQ, DIM), 0)
    cls_b = jnp.broadcast_to(cls_ref[...], (SEQ, DIM))
    x = jnp.where(row_id == 0, cls_b, emb) + pos_ref[...]

    # ---- L encoder layers, fully unrolled (L is a small static constant) ----
    for l in range(L):
        # LayerNorm_1 (over whole tensor) -> fused q/k/v matmul -> per-head attention ->
        # projection + residual.  All heads handled in this single kernel invocation.
        norm = _full_layernorm(x, ln1g_ref[l], ln1b_ref[l])
        qkv = jnp.dot(norm, wqkv_ref[l], preferred_element_type=F32) + bqkv_ref[l]  # (SEQ, 3*DIM)
        wp_l = wp_ref[l]                                                             # (DIM, DIM)

        proj = jnp.zeros((SEQ, DIM), F32)
        for h in range(HEADS):
            q = qkv[:, h * DH:(h + 1) * DH]                      # (SEQ, DH)
            k = qkv[:, DIM + h * DH:DIM + (h + 1) * DH]          # (SEQ, DH)
            v = qkv[:, 2 * DIM + h * DH:2 * DIM + (h + 1) * DH]  # (SEQ, DH)
            # scores = (q @ k^T) / sqrt(dh)   (transposed contraction, no kt materialized)
            s = jax.lax.dot_general(q, k, (((1,), (1,)), ((), ())),
                                    preferred_element_type=F32) * INV_SQRT_DH
            a = _softmax_rows(s, approx_recip=True)               # (SEQ, SEQ)
            head = jnp.dot(a, v, preferred_element_type=F32)      # (SEQ, DH)
            # concat(heads) @ Wp  ==  sum_h  head_h @ Wp[h*DH:(h+1)*DH, :]
            proj = proj + jnp.dot(head, wp_l[h * DH:(h + 1) * DH, :],
                                  preferred_element_type=F32)
        x = x + proj + bp_ref[l]                                   # residual: x + MSA(norm)

        # LayerNorm_2 -> MLP (Linear, GELU, Linear, GELU — as in the reference) -> residual
        norm = _full_layernorm(x, ln2g_ref[l], ln2b_ref[l])
        h1 = _gelu_exact(jnp.dot(norm, w1_ref[l], preferred_element_type=F32) + b1_ref[l])
        h2 = _gelu_exact(jnp.dot(h1, w2_ref[l], preferred_element_type=F32) + b2_ref[l])
        x = x + h2

    # ---- final LayerNorm, cls-token classifier head, softmax ----
    x = _full_layernorm(x, lng_ref[...], lnb_ref[...])
    logits = jnp.dot(x[0:1, :], hw_ref[...], preferred_element_type=F32) + hb_ref[...]  # (1, CLASSES)
    out_ref[...] = _softmax_rows(logits, approx_recip=False).astype(out_ref.dtype)


# --------------------------------------- wrappers ----------------------------------------
def patchify(img):
    # (C, H, W) -> (N, C*P*P); equivalent to unfold/unfold/transpose/permute/view in the module.
    # A zero row is prepended so the kernel input already has SEQ rows (row 0 = cls-token slot).
    c, h, w = img.shape
    nh, nw = h // P, w // P
    out = img.reshape(c, nh, P, nw, P).transpose(1, 3, 0, 2, 4)   # (nh, nw, C, P, P)
    patches = out.reshape(nh * nw, c * P * P)
    return jnp.concatenate([jnp.zeros((1, patches.shape[1]), patches.dtype), patches], axis=0)


def vision_transformer(img, params):
    patches = patchify(img)                                       # (SEQ, PATCH_FEAT), row 0 zeros
    probs = pl.pallas_call(
        _vit_kernel,
        out_shape=jax.ShapeDtypeStruct((1, CLASSES), F32),
    )(patches,
      params["patch_w"], params["patch_b"], params["cls"], params["pos"],
      params["ln1_g"], params["ln1_b"], params["wqkv"], params["bqkv"],
      params["wp"], params["bp"], params["ln2_g"], params["ln2_b"],
      params["w1"], params["b1"], params["w2"], params["b2"],
      params["ln_g"], params["ln_b"], params["head_w"], params["head_b"])
    return probs[0]                                                # (CLASSES,)


# ------------------------------ deterministic parameter init ----------------------------
def init_params(key):
    keys = iter(jax.random.split(key, 8 + 12 * L))

    def lin(in_f, out_f):
        bound = 1.0 / math.sqrt(in_f)
        w = jax.random.uniform(next(keys), (in_f, out_f), F32, -bound, bound)
        b = jax.random.uniform(next(keys), (out_f,), F32, -bound, bound)
        return w, b

    per = {k: [] for k in ("ln1_g", "ln1_b", "ln2_g", "ln2_b",
                           "wqkv", "bqkv", "wp", "bp", "w1", "b1", "w2", "b2")}
    for _ in range(L):
        wq, bq = lin(DIM, DIM)    # per-head (DIM, DH) q/k/v projections stacked along columns
        wk, bk = lin(DIM, DIM)
        wv, bv = lin(DIM, DIM)
        wp, bp = lin(DIM, DIM)
        w1, b1 = lin(DIM, DIM)
        w2, b2 = lin(DIM, DIM)
        per["ln1_g"].append(jnp.ones((SEQ, DIM), F32)); per["ln1_b"].append(jnp.zeros((SEQ, DIM), F32))
        per["ln2_g"].append(jnp.ones((SEQ, DIM), F32)); per["ln2_b"].append(jnp.zeros((SEQ, DIM), F32))
        # pack [q_h0..q_h3 | k_h0..k_h3 | v_h0..v_h3] -> one (DIM, 3*DIM) matmul per layer
        per["wqkv"].append(jnp.concatenate([wq, wk, wv], axis=1))
        per["bqkv"].append(jnp.concatenate([bq, bk, bv], axis=0).reshape(1, 3 * DIM))
        per["wp"].append(wp); per["bp"].append(bp.reshape(1, DIM))
        per["w1"].append(w1); per["b1"].append(b1.reshape(1, DIM))
        per["w2"].append(w2); per["b2"].append(b2.reshape(1, DIM))
    params = {k: jnp.stack(v, axis=0) for k, v in per.items()}     # stacked along the layer axis

    patch_w, patch_b = lin(PATCH_FEAT, DIM)
    head_w, head_b = lin(DIM, CLASSES)
    params.update(
        patch_w=patch_w, patch_b=patch_b.reshape(1, DIM),
        head_w=head_w, head_b=head_b.reshape(1, CLASSES),
        ln_g=jnp.ones((SEQ, DIM), F32), ln_b=jnp.zeros((SEQ, DIM), F32),
        cls=jnp.zeros((1, DIM), F32),          # nn.Parameter(torch.zeros((1, D)))
        pos=jnp.zeros((SEQ, DIM), F32),        # nn.Parameter(torch.zeros((N+1, D)))
    )
    return params


if __name__ == "__main__":
    key = jax.random.PRNGKey(0)
    k_img, k_params = jax.random.split(key)
    img = jax.random.normal(k_img, (C, H, W), F32)   # single CHW image, as in the PyTorch forward
    params = init_params(k_params)

    out = jax.jit(vision_transformer)(img, params)
    out = jax.block_until_ready(out)

    assert out.shape == (CLASSES,)
    out_np = np.asarray(out)
    assert np.isfinite(out_np).all()
    assert abs(float(out_np.sum()) - 1.0) < 1e-4   # softmax output sums to 1
    print("KERNEL_OK")
</pallas_src>

<mosaic_0001>
module attributes {stable_mosaic.version = 11 : i64} {
  func.func @_vit_kernel(%arg0: memref<5x192xf32, #tpu.memory_space<vmem>>, %arg1: memref<192x64xf32, #tpu.memory_space<vmem>>, %arg2: memref<1x64xf32, #tpu.memory_space<vmem>>, %arg3: memref<1x64xf32, #tpu.memory_space<vmem>>, %arg4: memref<5x64xf32, #tpu.memory_space<vmem>>, %arg5: memref<2x5x64xf32, #tpu.memory_space<vmem>>, %arg6: memref<2x5x64xf32, #tpu.memory_space<vmem>>, %arg7: memref<2x64x192xf32, #tpu.memory_space<vmem>>, %arg8: memref<2x1x192xf32, #tpu.memory_space<vmem>>, %arg9: memref<2x64x64xf32, #tpu.memory_space<vmem>>, %arg10: memref<2x1x64xf32, #tpu.memory_space<vmem>>, %arg11: memref<2x5x64xf32, #tpu.memory_space<vmem>>, %arg12: memref<2x5x64xf32, #tpu.memory_space<vmem>>, %arg13: memref<2x64x64xf32, #tpu.memory_space<vmem>>, %arg14: memref<2x1x64xf32, #tpu.memory_space<vmem>>, %arg15: memref<2x64x64xf32, #tpu.memory_space<vmem>>, %arg16: memref<2x1x64xf32, #tpu.memory_space<vmem>>, %arg17: memref<5x64xf32, #tpu.memory_space<vmem>>, %arg18: memref<5x64xf32, #tpu.memory_space<vmem>>, %arg19: memref<64x10xf32, #tpu.memory_space<vmem>>, %arg20: memref<1x10xf32, #tpu.memory_space<vmem>>, %arg21: memref<1x10xf32, #tpu.memory_space<vmem>>) attributes {dimension_semantics = [], scalar_prefetch = 0 : i64, scratch_operands = 0 : i64, tpu.core_type = #tpu.core_type<tc>} {
    %c0 = arith.constant 0 : index
    %c0_0 = arith.constant 0 : index
    %0 = vector.load %arg0[%c0, %c0_0] : memref<5x192xf32, #tpu.memory_space<vmem>>, vector<5x192xf32>
    %c0_1 = arith.constant 0 : index
    %c0_2 = arith.constant 0 : index
    %1 = vector.load %arg1[%c0_1, %c0_2] : memref<192x64xf32, #tpu.memory_space<vmem>>, vector<192x64xf32>
    %cst = arith.constant dense<0.000000e+00> : vector<5x64xf32>
    %2 = tpu.matmul %0, %1, %cst {dimension_numbers = #tpu.dot_dimension_numbers<[1], [0], [0], [1], [0, 0, 1, 1], [], []>} : vector<5x192xf32>, vector<192x64xf32>, vector<5x64xf32> -> vector<5x64xf32>
    %c0_3 = arith.constant 0 : index
    %c0_4 = arith.constant 0 : index
    %3 = vector.load %arg2[%c0_3, %c0_4] : memref<1x64xf32, #tpu.memory_space<vmem>>, vector<1x64xf32>
    %4 = vector.broadcast %3 : vector<1x64xf32> to vector<5x64xf32>
    %5 = arith.addf %2, %4 : vector<5x64xf32>
    %6 = tpu.iota {dimensions = array<i32: 0>} : vector<5x64xi32>
    %c0_5 = arith.constant 0 : index
    %c0_6 = arith.constant 0 : index
    %7 = vector.load %arg3[%c0_5, %c0_6] : memref<1x64xf32, #tpu.memory_space<vmem>>, vector<1x64xf32>
    %8 = vector.shape_cast %7 : vector<1x64xf32> to vector<1x64xf32>
    %9 = vector.broadcast %8 : vector<1x64xf32> to vector<5x64xf32>
    %c0_i32 = arith.constant 0 : i32
    %10 = vector.broadcast %c0_i32 : i32 to vector<5x64xi32>
    %11 = arith.cmpi eq, %6, %10 : vector<5x64xi32>
    %12 = arith.select %11, %9, %5 : vector<5x64xi1>, vector<5x64xf32>
    %c0_7 = arith.constant 0 : index
    %c0_8 = arith.constant 0 : index
    %13 = vector.load %arg4[%c0_7, %c0_8] : memref<5x64xf32, #tpu.memory_space<vmem>>, vector<5x64xf32>
    %14 = arith.addf %12, %13 : vector<5x64xf32>
    %c0_9 = arith.constant 0 : index
    %c0_10 = arith.constant 0 : index
    %c0_11 = arith.constant 0 : index
    %15 = vector.load %arg5[%c0_9, %c0_10, %c0_11] : memref<2x5x64xf32, #tpu.memory_space<vmem>>, vector<1x5x64xf32>
    %16 = vector.shape_cast %15 : vector<1x5x64xf32> to vector<5x64xf32>
    %c0_12 = arith.constant 0 : index
    %c0_13 = arith.constant 0 : index
    %c0_14 = arith.constant 0 : index
    %17 = vector.load %arg6[%c0_12, %c0_13, %c0_14] : memref<2x5x64xf32, #tpu.memory_space<vmem>>, vector<1x5x64xf32>
    %18 = vector.shape_cast %17 : vector<1x5x64xf32> to vector<5x64xf32>
    %cst_15 = arith.constant dense<0.000000e+00> : vector<5xf32>
    %19 = vector.multi_reduction <add>, %14, %cst_15 [1] : vector<5x64xf32> to vector<5xf32>
    %20 = vector.shape_cast %19 : vector<5xf32> to vector<5x1xf32>
    %cst_16 = arith.constant dense<0.000000e+00> : vector<1xf32>
    %21 = vector.multi_reduction <add>, %20, %cst_16 [0] : vector<5x1xf32> to vector<1xf32>
    %22 = vector.shape_cast %21 : vector<1xf32> to vector<1x1xf32>
    %cst_17 = arith.constant 3.125000e-03 : f32
    %23 = vector.broadcast %cst_17 : f32 to vector<1x1xf32>
    %24 = arith.mulf %22, %23 : vector<1x1xf32>
    %25 = vector.broadcast %24 : vector<1x1xf32> to vector<5x64xf32>
    %26 = arith.subf %14, %25 : vector<5x64xf32>
    %27 = arith.mulf %26, %26 : vector<5x64xf32>
    %cst_18 = arith.constant dense<0.000000e+00> : vector<5xf32>
    %28 = vector.multi_reduction <add>, %27, %cst_18 [1] : vector<5x64xf32> to vector<5xf32>
    %29 = vector.shape_cast %28 : vector<5xf32> to vector<5x1xf32>
    %cst_19 = arith.constant dense<0.000000e+00> : vector<1xf32>
    %30 = vector.multi_reduction <add>, %29, %cst_19 [0] : vector<5x1xf32> to vector<1xf32>
    %31 = vector.shape_cast %30 : vector<1xf32> to vector<1x1xf32>
    %cst_20 = arith.constant 3.125000e-03 : f32
    %32 = vector.broadcast %cst_20 : f32 to vector<1x1xf32>
    %33 = arith.mulf %31, %32 : vector<1x1xf32>
    %cst_21 = arith.constant 9.99999974E-6 : f32
    %34 = vector.broadcast %cst_21 : f32 to vector<1x1xf32>
    %35 = arith.addf %33, %34 : vector<1x1xf32>
    %36 = math.rsqrt %35 : vector<1x1xf32>
    %37 = vector.broadcast %36 : vector<1x1xf32> to vector<5x64xf32>
    %38 = arith.mulf %26, %37 : vector<5x64xf32>
    %39 = arith.mulf %38, %16 : vector<5x64xf32>
    %40 = arith.addf %39, %18 : vector<5x64xf32>
    %c0_22 = arith.constant 0 : index
    %c0_23 = arith.constant 0 : index
    %c0_24 = arith.constant 0 : index
    %41 = vector.load %arg7[%c0_22, %c0_23, %c0_24] : memref<2x64x192xf32, #tpu.memory_space<vmem>>, vector<1x64x192xf32>
    %42 = vector.shape_cast %41 : vector<1x64x192xf32> to vector<64x192xf32>
    %cst_25 = arith.constant dense<0.000000e+00> : vector<5x192xf32>
    %43 = tpu.matmul %40, %42, %cst_25 {dimension_numbers = #tpu.dot_dimension_numbers<[1], [0], [0], [1], [0, 0, 1, 1], [], []>} : vector<5x64xf32>, vector<64x192xf32>, vector<5x192xf32> -> vector<5x192xf32>
    %c0_26 = arith.constant 0 : index
    %c0_27 = arith.constant 0 : index
    %c0_28 = arith.constant 0 : index
    %44 = vector.load %arg8[%c0_26, %c0_27, %c0_28] : memref<2x1x192xf32, #tpu.memory_space<vmem>>, vector<1x1x192xf32>
    %45 = vector.shape_cast %44 : vector<1x1x192xf32> to vector<1x192xf32>
    %46 = vector.broadcast %45 : vector<1x192xf32> to vector<5x192xf32>
    %47 = arith.addf %43, %46 : vector<5x192xf32>
    %c0_29 = arith.constant 0 : index
    %c0_30 = arith.constant 0 : index
    %c0_31 = arith.constant 0 : index
    %48 = vector.load %arg9[%c0_29, %c0_30, %c0_31] : memref<2x64x64xf32, #tpu.memory_space<vmem>>, vector<1x64x64xf32>
    %49 = vector.shape_cast %48 : vector<1x64x64xf32> to vector<64x64xf32>
    %cst_32 = arith.constant 0.000000e+00 : f32
    %50 = vector.broadcast %cst_32 : f32 to vector<5x64xf32>
    %51 = vector.extract_strided_slice %47 {offsets = [0, 0], sizes = [5, 16], strides = [1, 1]} : vector<5x192xf32> to vector<5x16xf32>
    %52 = vector.extract_strided_slice %47 {offsets = [0, 64], sizes = [5, 16], strides = [1, 1]} : vector<5x192xf32> to vector<5x16xf32>
    %53 = vector.extract_strided_slice %47 {offsets = [0, 128], sizes = [5, 16], strides = [1, 1]} : vector<5x192xf32> to vector<5x16xf32>
    %cst_33 = arith.constant dense<0.000000e+00> : vector<5x5xf32>
    %54 = tpu.matmul %51, %52, %cst_33 {dimension_numbers = #tpu.dot_dimension_numbers<[1], [1], [0], [0], [0, 0, 1, 0], [], []>} : vector<5x16xf32>, vector<5x16xf32>, vector<5x5xf32> -> vector<5x5xf32>
    %cst_34 = arith.constant 2.500000e-01 : f32
    %55 = vector.broadcast %cst_34 : f32 to vector<5x5xf32>
    %56 = arith.mulf %54, %55 : vector<5x5xf32>
    %cst_35 = arith.constant dense<0xFF800000> : vector<5xf32>
    %57 = vector.multi_reduction <maximumf>, %56, %cst_35 [1] : vector<5x5xf32> to vector<5xf32>
    %58 = vector.shape_cast %57 : vector<5xf32> to vector<5x1xf32>
    %59 = vector.broadcast %58 : vector<5x1xf32> to vector<5x5xf32>
    %60 = arith.subf %56, %59 : vector<5x5xf32>
    %61 = math.exp %60 : vector<5x5xf32>
    %cst_36 = arith.constant dense<0.000000e+00> : vector<5xf32>
    %62 = vector.multi_reduction <add>, %61, %cst_36 [1] : vector<5x5xf32> to vector<5xf32>
    %63 = vector.shape_cast %62 : vector<5xf32> to vector<5x1xf32>
    %64 = tpu.reciprocal %63 {approx = true} : vector<5x1xf32> -> vector<5x1xf32>
    %65 = vector.broadcast %64 : vector<5x1xf32> to vector<5x5xf32>
    %66 = arith.mulf %61, %65 : vector<5x5xf32>
    %cst_37 = arith.constant dense<0.000000e+00> : vector<5x16xf32>
    %67 = tpu.matmul %66, %53, %cst_37 {dimension_numbers = #tpu.dot_dimension_numbers<[1], [0], [0], [1], [0, 0, 1, 1], [], []>} : vector<5x5xf32>, vector<5x16xf32>, vector<5x16xf32> -> vector<5x16xf32>
    %68 = vector.extract_strided_slice %49 {offsets = [0, 0], sizes = [16, 64], strides = [1, 1]} : vector<64x64xf32> to vector<16x64xf32>
    %cst_38 = arith.constant dense<0.000000e+00> : vector<5x64xf32>
    %69 = tpu.matmul %67, %68, %cst_38 {dimension_numbers = #tpu.dot_dimension_numbers<[1], [0], [0], [1], [0, 0, 1, 1], [], []>} : vector<5x16xf32>, vector<16x64xf32>, vector<5x64xf32> -> vector<5x64xf32>
    %70 = arith.addf %50, %69 : vector<5x64xf32>
    %71 = vector.extract_strided_slice %47 {offsets = [0, 16], sizes = [5, 16], strides = [1, 1]} : vector<5x192xf32> to vector<5x16xf32>
    %72 = vector.extract_strided_slice %47 {offsets = [0, 80], sizes = [5, 16], strides = [1, 1]} : vector<5x192xf32> to vector<5x16xf32>
    %73 = vector.extract_strided_slice %47 {offsets = [0, 144], sizes = [5, 16], strides = [1, 1]} : vector<5x192xf32> to vector<5x16xf32>
    %cst_39 = arith.constant dense<0.000000e+00> : vector<5x5xf32>
    %74 = tpu.matmul %71, %72, %cst_39 {dimension_numbers = #tpu.dot_dimension_numbers<[1], [1], [0], [0], [0, 0, 1, 0], [], []>} : vector<5x16xf32>, vector<5x16xf32>, vector<5x5xf32> -> vector<5x5xf32>
    %cst_40 = arith.constant 2.500000e-01 : f32
    %75 = vector.broadcast %cst_40 : f32 to vector<5x5xf32>
    %76 = arith.mulf %74, %75 : vector<5x5xf32>
    %cst_41 = arith.constant dense<0xFF800000> : vector<5xf32>
    %77 = vector.multi_reduction <maximumf>, %76, %cst_41 [1] : vector<5x5xf32> to vector<5xf32>
    %78 = vector.shape_cast %77 : vector<5xf32> to vector<5x1xf32>
    %79 = vector.broadcast %78 : vector<5x1xf32> to vector<5x5xf32>
    %80 = arith.subf %76, %79 : vector<5x5xf32>
    %81 = math.exp %80 : vector<5x5xf32>
    %cst_42 = arith.constant dense<0.000000e+00> : vector<5xf32>
    %82 = vector.multi_reduction <add>, %81, %cst_42 [1] : vector<5x5xf32> to vector<5xf32>
    %83 = vector.shape_cast %82 : vector<5xf32> to vector<5x1xf32>
    %84 = tpu.reciprocal %83 {approx = true} : vector<5x1xf32> -> vector<5x1xf32>
    %85 = vector.broadcast %84 : vector<5x1xf32> to vector<5x5xf32>
    %86 = arith.mulf %81, %85 : vector<5x5xf32>
    %cst_43 = arith.constant dense<0.000000e+00> : vector<5x16xf32>
    %87 = tpu.matmul %86, %73, %cst_43 {dimension_numbers = #tpu.dot_dimension_numbers<[1], [0], [0], [1], [0, 0, 1, 1], [], []>} : vector<5x5xf32>, vector<5x16xf32>, vector<5x16xf32> -> vector<5x16xf32>
    %88 = vector.extract_strided_slice %49 {offsets = [16, 0], sizes = [16, 64], strides = [1, 1]} : vector<64x64xf32> to vector<16x64xf32>
    %cst_44 = arith.constant dense<0.000000e+00> : vector<5x64xf32>
    %89 = tpu.matmul %87, %88, %cst_44 {dimension_numbers = #tpu.dot_dimension_numbers<[1], [0], [0], [1], [0, 0, 1, 1], [], []>} : vector<5x16xf32>, vector<16x64xf32>, vector<5x64xf32> -> vector<5x64xf32>
    %90 = arith.addf %70, %89 : vector<5x64xf32>
    %91 = vector.extract_strided_slice %47 {offsets = [0, 32], sizes = [5, 16], strides = [1, 1]} : vector<5x192xf32> to vector<5x16xf32>
    %92 = vector.extract_strided_slice %47 {offsets = [0, 96], sizes = [5, 16], strides = [1, 1]} : vector<5x192xf32> to vector<5x16xf32>
    %93 = vector.extract_strided_slice %47 {offsets = [0, 160], sizes = [5, 16], strides = [1, 1]} : vector<5x192xf32> to vector<5x16xf32>
    %cst_45 = arith.constant dense<0.000000e+00> : vector<5x5xf32>
    %94 = tpu.matmul %91, %92, %cst_45 {dimension_numbers = #tpu.dot_dimension_numbers<[1], [1], [0], [0], [0, 0, 1, 0], [], []>} : vector<5x16xf32>, vector<5x16xf32>, vector<5x5xf32> -> vector<5x5xf32>
    %cst_46 = arith.constant 2.500000e-01 : f32
    %95 = vector.broadcast %cst_46 : f32 to vector<5x5xf32>
    %96 = arith.mulf %94, %95 : vector<5x5xf32>
    %cst_47 = arith.constant dense<0xFF800000> : vector<5xf32>
    %97 = vector.multi_reduction <maximumf>, %96, %cst_47 [1] : vector<5x5xf32> to vector<5xf32>
    %98 = vector.shape_cast %97 : vector<5xf32> to vector<5x1xf32>
    %99 = vector.broadcast %98 : vector<5x1xf32> to vector<5x5xf32>
    %100 = arith.subf %96, %99 : vector<5x5xf32>
    %101 = math.exp %100 : vector<5x5xf32>
    %cst_48 = arith.constant dense<0.000000e+00> : vector<5xf32>
    %102 = vector.multi_reduction <add>, %101, %cst_48 [1] : vector<5x5xf32> to vector<5xf32>
    %103 = vector.shape_cast %102 : vector<5xf32> to vector<5x1xf32>
    %104 = tpu.reciprocal %103 {approx = true} : vector<5x1xf32> -> vector<5x1xf32>
    %105 = vector.broadcast %104 : vector<5x1xf32> to vector<5x5xf32>
    %106 = arith.mulf %101, %105 : vector<5x5xf32>
    %cst_49 = arith.constant dense<0.000000e+00> : vector<5x16xf32>
    %107 = tpu.matmul %106, %93, %cst_49 {dimension_numbers = #tpu.dot_dimension_numbers<[1], [0], [0], [1], [0, 0, 1, 1], [], []>} : vector<5x5xf32>, vector<5x16xf32>, vector<5x16xf32> -> vector<5x16xf32>
    %108 = vector.extract_strided_slice %49 {offsets = [32, 0], sizes = [16, 64], strides = [1, 1]} : vector<64x64xf32> to vector<16x64xf32>
    %cst_50 = arith.constant dense<0.000000e+00> : vector<5x64xf32>
    %109 = tpu.matmul %107, %108, %cst_50 {dimension_numbers = #tpu.dot_dimension_numbers<[1], [0], [0], [1], [0, 0, 1, 1], [], []>} : vector<5x16xf32>, vector<16x64xf32>, vector<5x64xf32> -> vector<5x64xf32>
    %110 = arith.addf %90, %109 : vector<5x64xf32>
    %111 = vector.extract_strided_slice %47 {offsets = [0, 48], sizes = [5, 16], strides = [1, 1]} : vector<5x192xf32> to vector<5x16xf32>
    %112 = vector.extract_strided_slice %47 {offsets = [0, 112], sizes = [5, 16], strides = [1, 1]} : vector<5x192xf32> to vector<5x16xf32>
    %113 = vector.extract_strided_slice %47 {offsets = [0, 176], sizes = [5, 16], strides = [1, 1]} : vector<5x192xf32> to vector<5x16xf32>
    %cst_51 = arith.constant dense<0.000000e+00> : vector<5x5xf32>
    %114 = tpu.matmul %111, %112, %cst_51 {dimension_numbers = #tpu.dot_dimension_numbers<[1], [1], [0], [0], [0, 0, 1, 0], [], []>} : vector<5x16xf32>, vector<5x16xf32>, vector<5x5xf32> -> vector<5x5xf32>
    %cst_52 = arith.constant 2.500000e-01 : f32
    %115 = vector.broadcast %cst_52 : f32 to vector<5x5xf32>
    %116 = arith.mulf %114, %115 : vector<5x5xf32>
    %cst_53 = arith.constant dense<0xFF800000> : vector<5xf32>
    %117 = vector.multi_reduction <maximumf>, %116, %cst_53 [1] : vector<5x5xf32> to vector<5xf32>
    %118 = vector.shape_cast %117 : vector<5xf32> to vector<5x1xf32>
    %119 = vector.broadcast %118 : vector<5x1xf32> to vector<5x5xf32>
    %120 = arith.subf %116, %119 : vector<5x5xf32>
    %121 = math.exp %120 : vector<5x5xf32>
    %cst_54 = arith.constant dense<0.000000e+00> : vector<5xf32>
    %122 = vector.multi_reduction <add>, %121, %cst_54 [1] : vector<5x5xf32> to vector<5xf32>
    %123 = vector.shape_cast %122 : vector<5xf32> to vector<5x1xf32>
    %124 = tpu.reciprocal %123 {approx = true} : vector<5x1xf32> -> vector<5x1xf32>
    %125 = vector.broadcast %124 : vector<5x1xf32> to vector<5x5xf32>
    %126 = arith.mulf %121, %125 : vector<5x5xf32>
    %cst_55 = arith.constant dense<0.000000e+00> : vector<5x16xf32>
    %127 = tpu.matmul %126, %113, %cst_55 {dimension_numbers = #tpu.dot_dimension_numbers<[1], [0], [0], [1], [0, 0, 1, 1], [], []>} : vector<5x5xf32>, vector<5x16xf32>, vector<5x16xf32> -> vector<5x16xf32>
    %128 = vector.extract_strided_slice %49 {offsets = [48, 0], sizes = [16, 64], strides = [1, 1]} : vector<64x64xf32> to vector<16x64xf32>
    %cst_56 = arith.constant dense<0.000000e+00> : vector<5x64xf32>
    %129 = tpu.matmul %127, %128, %cst_56 {dimension_numbers = #tpu.dot_dimension_numbers<[1], [0], [0], [1], [0, 0, 1, 1], [], []>} : vector<5x16xf32>, vector<16x64xf32>, vector<5x64xf32> -> vector<5x64xf32>
    %130 = arith.addf %110, %129 : vector<5x64xf32>
    %131 = arith.addf %14, %130 : vector<5x64xf32>
    %c0_57 = arith.constant 0 : index
    %c0_58 = arith.constant 0 : index
    %c0_59 = arith.constant 0 : index
    %132 = vector.load %arg10[%c0_57, %c0_58, %c0_59] : memref<2x1x64xf32, #tpu.memory_space<vmem>>, vector<1x1x64xf32>
    %133 = vector.shape_cast %132 : vector<1x1x64xf32> to vector<1x64xf32>
    %134 = vector.broadcast %133 : vector<1x64xf32> to vector<5x64xf32>
    %135 = arith.addf %131, %134 : vector<5x64xf32>
    %c0_60 = arith.constant 0 : index
    %c0_61 = arith.constant 0 : index
    %c0_62 = arith.constant 0 : index
    %136 = vector.load %arg11[%c0_60, %c0_61, %c0_62] : memref<2x5x64xf32, #tpu.memory_space<vmem>>, vector<1x5x64xf32>
    %137 = vector.shape_cast %136 : vector<1x5x64xf32> to vector<5x64xf32>
    %c0_63 = arith.constant 0 : index
    %c0_64 = arith.constant 0 : index
    %c0_65 = arith.constant 0 : index
    %138 = vector.load %arg12[%c0_63, %c0_64, %c0_65] : memref<2x5x64xf32, #tpu.memory_space<vmem>>, vector<1x5x64xf32>
    %139 = vector.shape_cast %138 : vector<1x5x64xf32> to vector<5x64xf32>
    %cst_66 = arith.constant dense<0.000000e+00> : vector<5xf32>
    %140 = vector.multi_reduction <add>, %135, %cst_66 [1] : vector<5x64xf32> to vector<5xf32>
    %141 = vector.shape_cast %140 : vector<5xf32> to vector<5x1xf32>
    %cst_67 = arith.constant dense<0.000000e+00> : vector<1xf32>
    %142 = vector.multi_reduction <add>, %141, %cst_67 [0] : vector<5x1xf32> to vector<1xf32>
    %143 = vector.shape_cast %142 : vector<1xf32> to vector<1x1xf32>
    %cst_68 = arith.constant 3.125000e-03 : f32
    %144 = vector.broadcast %cst_68 : f32 to vector<1x1xf32>
    %145 = arith.mulf %143, %144 : vector<1x1xf32>
    %146 = vector.broadcast %145 : vector<1x1xf32> to vector<5x64xf32>
    %147 = arith.subf %135, %146 : vector<5x64xf32>
    %148 = arith.mulf %147, %147 : vector<5x64xf32>
    %cst_69 = arith.constant dense<0.000000e+00> : vector<5xf32>
    %149 = vector.multi_reduction <add>, %148, %cst_69 [1] : vector<5x64xf32> to vector<5xf32>
    %150 = vector.shape_cast %149 : vector<5xf32> to vector<5x1xf32>
    %cst_70 = arith.constant dense<0.000000e+00> : vector<1xf32>
    %151 = vector.multi_reduction <add>, %150, %cst_70 [0] : vector<5x1xf32> to vector<1xf32>
    %152 = vector.shape_cast %151 : vector<1xf32> to vector<1x1xf32>
    %cst_71 = arith.constant 3.125000e-03 : f32
    %153 = vector.broadcast %cst_71 : f32 to vector<1x1xf32>
    %154 = arith.mulf %152, %153 : vector<1x1xf32>
    %cst_72 = arith.constant 9.99999974E-6 : f32
    %155 = vector.broadcast %cst_72 : f32 to vector<1x1xf32>
    %156 = arith.addf %154, %155 : vector<1x1xf32>
    %157 = math.rsqrt %156 : vector<1x1xf32>
    %158 = vector.broadcast %157 : vector<1x1xf32> to vector<5x64xf32>
    %159 = arith.mulf %147, %158 : vector<5x64xf32>
    %160 = arith.mulf %159, %137 : vector<5x64xf32>
    %161 = arith.addf %160, %139 : vector<5x64xf32>
    %c0_73 = arith.constant 0 : index
    %c0_74 = arith.constant 0 : index
    %c0_75 = arith.constant 0 : index
    %162 = vector.load %arg13[%c0_73, %c0_74, %c0_75] : memref<2x64x64xf32, #tpu.memory_space<vmem>>, vector<1x64x64xf32>
    %163 = vector.shape_cast %162 : vector<1x64x64xf32> to vector<64x64xf32>
    %cst_76 = arith.constant dense<0.000000e+00> : vector<5x64xf32>
    %164 = tpu.matmul %161, %163, %cst_76 {dimension_numbers = #tpu.dot_dimension_numbers<[1], [0], [0], [1], [0, 0, 1, 1], [], []>} : vector<5x64xf32>, vector<64x64xf32>, vector<5x64xf32> -> vector<5x64xf32>
    %c0_77 = arith.constant 0 : index
    %c0_78 = arith.constant 0 : index
    %c0_79 = arith.constant 0 : index
    %165 = vector.load %arg14[%c0_77, %c0_78, %c0_79] : memref<2x1x64xf32, #tpu.memory_space<vmem>>, vector<1x1x64xf32>
    %166 = vector.shape_cast %165 : vector<1x1x64xf32> to vector<1x64xf32>
    %167 = vector.broadcast %166 : vector<1x64xf32> to vector<5x64xf32>
    %168 = arith.addf %164, %167 : vector<5x64xf32>
    %cst_80 = arith.constant 5.000000e-01 : f32
    %169 = vector.broadcast %cst_80 : f32 to vector<5x64xf32>
    %170 = arith.mulf %169, %168 : vector<5x64xf32>
    %cst_81 = arith.constant 0.707106769 : f32
    %171 = vector.broadcast %cst_81 : f32 to vector<5x64xf32>
    %172 = arith.mulf %168, %171 : vector<5x64xf32>
    %cst_82 = arith.constant 0.000000e+00 : f32
    %173 = vector.broadcast %cst_82 : f32 to vector<5x64xf32>
    %174 = arith.cmpf olt, %172, %173 : vector<5x64xf32>
    %cst_83 = arith.constant -1.000000e+00 : f32
    %cst_84 = arith.constant 1.000000e+00 : f32
    %175 = vector.broadcast %cst_83 : f32 to vector<5x64xf32>
    %176 = vector.broadcast %cst_84 : f32 to vector<5x64xf32>
    %177 = arith.select %174, %175, %176 : vector<5x64xi1>, vector<5x64xf32>
    %178 = math.absf %172 : vector<5x64xf32>
    %cst_85 = arith.constant 0.327591091 : f32
    %179 = vector.broadcast %cst_85 : f32 to vector<5x64xf32>
    %180 = arith.mulf %179, %178 : vector<5x64xf32>
    %cst_86 = arith.constant 1.000000e+00 : f32
    %181 = vector.broadcast %cst_86 : f32 to vector<5x64xf32>
    %182 = arith.addf %181, %180 : vector<5x64xf32>
    %cst_87 = arith.constant 1.000000e+00 : f32
    %183 = vector.broadcast %cst_87 : f32 to vector<5x64xf32>
    %184 = arith.divf %183, %182 : vector<5x64xf32>
    %cst_88 = arith.constant 1.06140542 : f32
    %185 = vector.broadcast %cst_88 : f32 to vector<5x64xf32>
    %186 = arith.mulf %185, %184 : vector<5x64xf32>
    %cst_89 = arith.constant -1.45315206 : f32
    %187 = vector.broadcast %cst_89 : f32 to vector<5x64xf32>
    %188 = arith.addf %186, %187 : vector<5x64xf32>
    %189 = arith.mulf %188, %184 : vector<5x64xf32>
    %cst_90 = arith.constant 1.42141378 : f32
    %190 = vector.broadcast %cst_90 : f32 to vector<5x64xf32>
    %191 = arith.addf %189, %190 : vector<5x64xf32>
    %192 = arith.mulf %191, %184 : vector<5x64xf32>
    %cst_91 = arith.constant -0.284496725 : f32
    %193 = vector.broadcast %cst_91 : f32 to vector<5x64xf32>
    %194 = arith.addf %192, %193 : vector<5x64xf32>
    %195 = arith.mulf %194, %184 : vector<5x64xf32>
    %cst_92 = arith.constant 0.254829586 : f32
    %196 = vector.broadcast %cst_92 : f32 to vector<5x64xf32>
    %197 = arith.addf %195, %196 : vector<5x64xf32>
    %198 = arith.mulf %197, %184 : vector<5x64xf32>
    %cst_93 = arith.constant 0.000000e+00 : f32
    %199 = vector.broadcast %cst_93 : f32 to vector<5x64xf32>
    %200 = arith.subf %199, %178 : vector<5x64xf32>
    %201 = arith.mulf %200, %178 : vector<5x64xf32>
    %202 = math.exp %201 : vector<5x64xf32>
    %203 = arith.mulf %198, %202 : vector<5x64xf32>
    %cst_94 = arith.constant 1.000000e+00 : f32
    %204 = vector.broadcast %cst_94 : f32 to vector<5x64xf32>
    %205 = arith.subf %204, %203 : vector<5x64xf32>
    %206 = arith.mulf %177, %205 : vector<5x64xf32>
    %cst_95 = arith.constant 1.000000e+00 : f32
    %207 = vector.broadcast %cst_95 : f32 to vector<5x64xf32>
    %208 = arith.addf %207, %206 : vector<5x64xf32>
    %209 = arith.mulf %170, %208 : vector<5x64xf32>
    %c0_96 = arith.constant 0 : index
    %c0_97 = arith.constant 0 : index
    %c0_98 = arith.constant 0 : index
    %210 = vector.load %arg15[%c0_96, %c0_97, %c0_98] : memref<2x64x64xf32, #tpu.memory_space<vmem>>, vector<1x64x64xf32>
    %211 = vector.shape_cast %210 : vector<1x64x64xf32> to vector<64x64xf32>
    %cst_99 = arith.constant dense<0.000000e+00> : vector<5x64xf32>
    %212 = tpu.matmul %209, %211, %cst_99 {dimension_numbers = #tpu.dot_dimension_numbers<[1], [0], [0], [1], [0, 0, 1, 1], [], []>} : vector<5x64xf32>, vector<64x64xf32>, vector<5x64xf32> -> vector<5x64xf32>
    %c0_100 = arith.constant 0 : index
    %c0_101 = arith.constant 0 : index
    %c0_102 = arith.constant 0 : index
    %213 = vector.load %arg16[%c0_100, %c0_101, %c0_102] : memref<2x1x64xf32, #tpu.memory_space<vmem>>, vector<1x1x64xf32>
    %214 = vector.shape_cast %213 : vector<1x1x64xf32> to vector<1x64xf32>
    %215 = vector.broadcast %214 : vector<1x64xf32> to vector<5x64xf32>
    %216 = arith.addf %212, %215 : vector<5x64xf32>
    %cst_103 = arith.constant 5.000000e-01 : f32
    %217 = vector.broadcast %cst_103 : f32 to vector<5x64xf32>
    %218 = arith.mulf %217, %216 : vector<5x64xf32>
    %cst_104 = arith.constant 0.707106769 : f32
    %219 = vector.broadcast %cst_104 : f32 to vector<5x64xf32>
    %220 = arith.mulf %216, %219 : vector<5x64xf32>
    %cst_105 = arith.constant 0.000000e+00 : f32
    %221 = vector.broadcast %cst_105 : f32 to vector<5x64xf32>
    %222 = arith.cmpf olt, %220, %221 : vector<5x64xf32>
    %cst_106 = arith.constant -1.000000e+00 : f32
    %cst_107 = arith.constant 1.000000e+00 : f32
    %223 = vector.broadcast %cst_106 : f32 to vector<5x64xf32>
    %224 = vector.broadcast %cst_107 : f32 to vector<5x64xf32>
    %225 = arith.select %222, %223, %224 : vector<5x64xi1>, vector<5x64xf32>
    %226 = math.absf %220 : vector<5x64xf32>
    %cst_108 = arith.constant 0.327591091 : f32
    %227 = vector.broadcast %cst_108 : f32 to vector<5x64xf32>
    %228 = arith.mulf %227, %226 : vector<5x64xf32>
    %cst_109 = arith.constant 1.000000e+00 : f32
    %229 = vector.broadcast %cst_109 : f32 to vector<5x64xf32>
    %230 = arith.addf %229, %228 : vector<5x64xf32>
    %cst_110 = arith.constant 1.000000e+00 : f32
    %231 = vector.broadcast %cst_110 : f32 to vector<5x64xf32>
    %232 = arith.divf %231, %230 : vector<5x64xf32>
    %cst_111 = arith.constant 1.06140542 : f32
    %233 = vector.broadcast %cst_111 : f32 to vector<5x64xf32>
    %234 = arith.mulf %233, %232 : vector<5x64xf32>
    %cst_112 = arith.constant -1.45315206 : f32
    %235 = vector.broadcast %cst_112 : f32 to vector<5x64xf32>
    %236 = arith.addf %234, %235 : vector<5x64xf32>
    %237 = arith.mulf %236, %232 : vector<5x64xf32>
    %cst_113 = arith.constant 1.42141378 : f32
    %238 = vector.broadcast %cst_113 : f32 to vector<5x64xf32>
    %239 = arith.addf %237, %238 : vector<5x64xf32>
    %240 = arith.mulf %239, %232 : vector<5x64xf32>
    %cst_114 = arith.constant -0.284496725 : f32
    %241 = vector.broadcast %cst_114 : f32 to vector<5x64xf32>
    %242 = arith.addf %240, %241 : vector<5x64xf32>
    %243 = arith.mulf %242, %232 : vector<5x64xf32>
    %cst_115 = arith.constant 0.254829586 : f32
    %244 = vector.broadcast %cst_115 : f32 to vector<5x64xf32>
    %245 = arith.addf %243, %244 : vector<5x64xf32>
    %246 = arith.mulf %245, %232 : vector<5x64xf32>
    %cst_116 = arith.constant 0.000000e+00 : f32
    %247 = vector.broadcast %cst_116 : f32 to vector<5x64xf32>
    %248 = arith.subf %247, %226 : vector<5x64xf32>
    %249 = arith.mulf %248, %226 : vector<5x64xf32>
    %250 = math.exp %249 : vector<5x64xf32>
    %251 = arith.mulf %246, %250 : vector<5x64xf32>
    %cst_117 = arith.constant 1.000000e+00 : f32
    %252 = vector.broadcast %cst_117 : f32 to vector<5x64xf32>
    %253 = arith.subf %252, %251 : vector<5x64xf32>
    %254 = arith.mulf %225, %253 : vector<5x64xf32>
    %cst_118 = arith.constant 1.000000e+00 : f32
    %255 = vector.broadcast %cst_118 : f32 to vector<5x64xf32>
    %256 = arith.addf %255, %254 : vector<5x64xf32>
    %257 = arith.mulf %218, %256 : vector<5x64xf32>
    %258 = arith.addf %135, %257 : vector<5x64xf32>
    %c1 = arith.constant 1 : index
    %c0_119 = arith.constant 0 : index
    %c0_120 = arith.constant 0 : index
    %259 = vector.load %arg5[%c1, %c0_119, %c0_120] : memref<2x5x64xf32, #tpu.memory_space<vmem>>, vector<1x5x64xf32>
    %260 = vector.shape_cast %259 : vector<1x5x64xf32> to vector<5x64xf32>
    %c1_121 = arith.constant 1 : index
    %c0_122 = arith.constant 0 : index
    %c0_123 = arith.constant 0 : index
    %261 = vector.load %arg6[%c1_121, %c0_122, %c0_123] : memref<2x5x64xf32, #tpu.memory_space<vmem>>, vector<1x5x64xf32>
    %262 = vector.shape_cast %261 : vector<1x5x64xf32> to vector<5x64xf32>
    %cst_124 = arith.constant dense<0.000000e+00> : vector<5xf32>
    %263 = vector.multi_reduction <add>, %258, %cst_124 [1] : vector<5x64xf32> to vector<5xf32>
    %264 = vector.shape_cast %263 : vector<5xf32> to vector<5x1xf32>
    %cst_125 = arith.constant dense<0.000000e+00> : vector<1xf32>
    %265 = vector.multi_reduction <add>, %264, %cst_125 [0] : vector<5x1xf32> to vector<1xf32>
    %266 = vector.shape_cast %265 : vector<1xf32> to vector<1x1xf32>
    %cst_126 = arith.constant 3.125000e-03 : f32
    %267 = vector.broadcast %cst_126 : f32 to vector<1x1xf32>
    %268 = arith.mulf %266, %267 : vector<1x1xf32>
    %269 = vector.broadcast %268 : vector<1x1xf32> to vector<5x64xf32>
    %270 = arith.subf %258, %269 : vector<5x64xf32>
    %271 = arith.mulf %270, %270 : vector<5x64xf32>
    %cst_127 = arith.constant dense<0.000000e+00> : vector<5xf32>
    %272 = vector.multi_reduction <add>, %271, %cst_127 [1] : vector<5x64xf32> to vector<5xf32>
    %273 = vector.shape_cast %272 : vector<5xf32> to vector<5x1xf32>
    %cst_128 = arith.constant dense<0.000000e+00> : vector<1xf32>
    %274 = vector.multi_reduction <add>, %273, %cst_128 [0] : vector<5x1xf32> to vector<1xf32>
    %275 = vector.shape_cast %274 : vector<1xf32> to vector<1x1xf32>
    %cst_129 = arith.constant 3.125000e-03 : f32
    %276 = vector.broadcast %cst_129 : f32 to vector<1x1xf32>
    %277 = arith.mulf %275, %276 : vector<1x1xf32>
    %cst_130 = arith.constant 9.99999974E-6 : f32
    %278 = vector.broadcast %cst_130 : f32 to vector<1x1xf32>
    %279 = arith.addf %277, %278 : vector<1x1xf32>
    %280 = math.rsqrt %279 : vector<1x1xf32>
    %281 = vector.broadcast %280 : vector<1x1xf32> to vector<5x64xf32>
    %282 = arith.mulf %270, %281 : vector<5x64xf32>
    %283 = arith.mulf %282, %260 : vector<5x64xf32>
    %284 = arith.addf %283, %262 : vector<5x64xf32>
    %c1_131 = arith.constant 1 : index
    %c0_132 = arith.constant 0 : index
    %c0_133 = arith.constant 0 : index
    %285 = vector.load %arg7[%c1_131, %c0_132, %c0_133] : memref<2x64x192xf32, #tpu.memory_space<vmem>>, vector<1x64x192xf32>
    %286 = vector.shape_cast %285 : vector<1x64x192xf32> to vector<64x192xf32>
    %cst_134 = arith.constant dense<0.000000e+00> : vector<5x192xf32>
    %287 = tpu.matmul %284, %286, %cst_134 {dimension_numbers = #tpu.dot_dimension_numbers<[1], [0], [0], [1], [0, 0, 1, 1], [], []>} : vector<5x64xf32>, vector<64x192xf32>, vector<5x192xf32> -> vector<5x192xf32>
    %c1_135 = arith.constant 1 : index
    %c0_136 = arith.constant 0 : index
    %c0_137 = arith.constant 0 : index
    %288 = vector.load %arg8[%c1_135, %c0_136, %c0_137] : memref<2x1x192xf32, #tpu.memory_space<vmem>>, vector<1x1x192xf32>
    %289 = vector.shape_cast %288 : vector<1x1x192xf32> to vector<1x192xf32>
    %290 = vector.broadcast %289 : vector<1x192xf32> to vector<5x192xf32>
    %291 = arith.addf %287, %290 : vector<5x192xf32>
    %c1_138 = arith.constant 1 : index
    %c0_139 = arith.constant 0 : index
    %c0_140 = arith.constant 0 : index
    %292 = vector.load %arg9[%c1_138, %c0_139, %c0_140] : memref<2x64x64xf32, #tpu.memory_space<vmem>>, vector<1x64x64xf32>
    %293 = vector.shape_cast %292 : vector<1x64x64xf32> to vector<64x64xf32>
    %cst_141 = arith.constant 0.000000e+00 : f32
    %294 = vector.broadcast %cst_141 : f32 to vector<5x64xf32>
    %295 = vector.extract_strided_slice %291 {offsets = [0, 0], sizes = [5, 16], strides = [1, 1]} : vector<5x192xf32> to vector<5x16xf32>
    %296 = vector.extract_strided_slice %291 {offsets = [0, 64], sizes = [5, 16], strides = [1, 1]} : vector<5x192xf32> to vector<5x16xf32>
    %297 = vector.extract_strided_slice %291 {offsets = [0, 128], sizes = [5, 16], strides = [1, 1]} : vector<5x192xf32> to vector<5x16xf32>
    %cst_142 = arith.constant dense<0.000000e+00> : vector<5x5xf32>
    %298 = tpu.matmul %295, %296, %cst_142 {dimension_numbers = #tpu.dot_dimension_numbers<[1], [1], [0], [0], [0, 0, 1, 0], [], []>} : vector<5x16xf32>, vector<5x16xf32>, vector<5x5xf32> -> vector<5x5xf32>
    %cst_143 = arith.constant 2.500000e-01 : f32
    %299 = vector.broadcast %cst_143 : f32 to vector<5x5xf32>
    %300 = arith.mulf %298, %299 : vector<5x5xf32>
    %cst_144 = arith.constant dense<0xFF800000> : vector<5xf32>
    %301 = vector.multi_reduction <maximumf>, %300, %cst_144 [1] : vector<5x5xf32> to vector<5xf32>
    %302 = vector.shape_cast %301 : vector<5xf32> to vector<5x1xf32>
    %303 = vector.broadcast %302 : vector<5x1xf32> to vector<5x5xf32>
    %304 = arith.subf %300, %303 : vector<5x5xf32>
    %305 = math.exp %304 : vector<5x5xf32>
    %cst_145 = arith.constant dense<0.000000e+00> : vector<5xf32>
    %306 = vector.multi_reduction <add>, %305, %cst_145 [1] : vector<5x5xf32> to vector<5xf32>
    %307 = vector.shape_cast %306 : vector<5xf32> to vector<5x1xf32>
    %308 = tpu.reciprocal %307 {approx = true} : vector<5x1xf32> -> vector<5x1xf32>
    %309 = vector.broadcast %308 : vector<5x1xf32> to vector<5x5xf32>
    %310 = arith.mulf %305, %309 : vector<5x5xf32>
    %cst_146 = arith.constant dense<0.000000e+00> : vector<5x16xf32>
    %311 = tpu.matmul %310, %297, %cst_146 {dimension_numbers = #tpu.dot_dimension_numbers<[1], [0], [0], [1], [0, 0, 1, 1], [], []>} : vector<5x5xf32>, vector<5x16xf32>, vector<5x16xf32> -> vector<5x16xf32>
    %312 = vector.extract_strided_slice %293 {offsets = [0, 0], sizes = [16, 64], strides = [1, 1]} : vector<64x64xf32> to vector<16x64xf32>
    %cst_147 = arith.constant dense<0.000000e+00> : vector<5x64xf32>
    %313 = tpu.matmul %311, %312, %cst_147 {dimension_numbers = #tpu.dot_dimension_numbers<[1], [0], [0], [1], [0, 0, 1, 1], [], []>} : vector<5x16xf32>, vector<16x64xf32>, vector<5x64xf32> -> vector<5x64xf32>
    %314 = arith.addf %294, %313 : vector<5x64xf32>
    %315 = vector.extract_strided_slice %291 {offsets = [0, 16], sizes = [5, 16], strides = [1, 1]} : vector<5x192xf32> to vector<5x16xf32>
    %316 = vector.extract_strided_slice %291 {offsets = [0, 80], sizes = [5, 16], strides = [1, 1]} : vector<5x192xf32> to vector<5x16xf32>
    %317 = vector.extract_strided_slice %291 {offsets = [0, 144], sizes = [5, 16], strides = [1, 1]} : vector<5x192xf32> to vector<5x16xf32>
    %cst_148 = arith.constant dense<0.000000e+00> : vector<5x5xf32>
    %318 = tpu.matmul %315, %316, %cst_148 {dimension_numbers = #tpu.dot_dimension_numbers<[1], [1], [0], [0], [0, 0, 1, 0], [], []>} : vector<5x16xf32>, vector<5x16xf32>, vector<5x5xf32> -> vector<5x5xf32>
    %cst_149 = arith.constant 2.500000e-01 : f32
    %319 = vector.broadcast %cst_149 : f32 to vector<5x5xf32>
    %320 = arith.mulf %318, %319 : vector<5x5xf32>
    %cst_150 = arith.constant dense<0xFF800000> : vector<5xf32>
    %321 = vector.multi_reduction <maximumf>, %320, %cst_150 [1] : vector<5x5xf32> to vector<5xf32>
    %322 = vector.shape_cast %321 : vector<5xf32> to vector<5x1xf32>
    %323 = vector.broadcast %322 : vector<5x1xf32> to vector<5x5xf32>
    %324 = arith.subf %320, %323 : vector<5x5xf32>
    %325 = math.exp %324 : vector<5x5xf32>
    %cst_151 = arith.constant dense<0.000000e+00> : vector<5xf32>
    %326 = vector.multi_reduction <add>, %325, %cst_151 [1] : vector<5x5xf32> to vector<5xf32>
    %327 = vector.shape_cast %326 : vector<5xf32> to vector<5x1xf32>
    %328 = tpu.reciprocal %327 {approx = true} : vector<5x1xf32> -> vector<5x1xf32>
    %329 = vector.broadcast %328 : vector<5x1xf32> to vector<5x5xf32>
    %330 = arith.mulf %325, %329 : vector<5x5xf32>
    %cst_152 = arith.constant dense<0.000000e+00> : vector<5x16xf32>
    %331 = tpu.matmul %330, %317, %cst_152 {dimension_numbers = #tpu.dot_dimension_numbers<[1], [0], [0], [1], [0, 0, 1, 1], [], []>} : vector<5x5xf32>, vector<5x16xf32>, vector<5x16xf32> -> vector<5x16xf32>
    %332 = vector.extract_strided_slice %293 {offsets = [16, 0], sizes = [16, 64], strides = [1, 1]} : vector<64x64xf32> to vector<16x64xf32>
    %cst_153 = arith.constant dense<0.000000e+00> : vector<5x64xf32>
    %333 = tpu.matmul %331, %332, %cst_153 {dimension_numbers = #tpu.dot_dimension_numbers<[1], [0], [0], [1], [0, 0, 1, 1], [], []>} : vector<5x16xf32>, vector<16x64xf32>, vector<5x64xf32> -> vector<5x64xf32>
    %334 = arith.addf %314, %333 : vector<5x64xf32>
    %335 = vector.extract_strided_slice %291 {offsets = [0, 32], sizes = [5, 16], strides = [1, 1]} : vector<5x192xf32> to vector<5x16xf32>
    %336 = vector.extract_strided_slice %291 {offsets = [0, 96], sizes = [5, 16], strides = [1, 1]} : vector<5x192xf32> to vector<5x16xf32>
    %337 = vector.extract_strided_slice %291 {offsets = [0, 160], sizes = [5, 16], strides = [1, 1]} : vector<5x192xf32> to vector<5x16xf32>
    %cst_154 = arith.constant dense<0.000000e+00> : vector<5x5xf32>
    %338 = tpu.matmul %335, %336, %cst_154 {dimension_numbers = #tpu.dot_dimension_numbers<[1], [1], [0], [0], [0, 0, 1, 0], [], []>} : vector<5x16xf32>, vector<5x16xf32>, vector<5x5xf32> -> vector<5x5xf32>
    %cst_155 = arith.constant 2.500000e-01 : f32
    %339 = vector.broadcast %cst_155 : f32 to vector<5x5xf32>
    %340 = arith.mulf %338, %339 : vector<5x5xf32>
    %cst_156 = arith.constant dense<0xFF800000> : vector<5xf32>
    %341 = vector.multi_reduction <maximumf>, %340, %cst_156 [1] : vector<5x5xf32> to vector<5xf32>
    %342 = vector.shape_cast %341 : vector<5xf32> to vector<5x1xf32>
    %343 = vector.broadcast %342 : vector<5x1xf32> to vector<5x5xf32>
    %344 = arith.subf %340, %343 : vector<5x5xf32>
    %345 = math.exp %344 : vector<5x5xf32>
    %cst_157 = arith.constant dense<0.000000e+00> : vector<5xf32>
    %346 = vector.multi_reduction <add>, %345, %cst_157 [1] : vector<5x5xf32> to vector<5xf32>
    %347 = vector.shape_cast %346 : vector<5xf32> to vector<5x1xf32>
    %348 = tpu.reciprocal %347 {approx = true} : vector<5x1xf32> -> vector<5x1xf32>
    %349 = vector.broadcast %348 : vector<5x1xf32> to vector<5x5xf32>
    %350 = arith.mulf %345, %349 : vector<5x5xf32>
    %cst_158 = arith.constant dense<0.000000e+00> : vector<5x16xf32>
    %351 = tpu.matmul %350, %337, %cst_158 {dimension_numbers = #tpu.dot_dimension_numbers<[1], [0], [0], [1], [0, 0, 1, 1], [], []>} : vector<5x5xf32>, vector<5x16xf32>, vector<5x16xf32> -> vector<5x16xf32>
    %352 = vector.extract_strided_slice %293 {offsets = [32, 0], sizes = [16, 64], strides = [1, 1]} : vector<64x64xf32> to vector<16x64xf32>
    %cst_159 = arith.constant dense<0.000000e+00> : vector<5x64xf32>
    %353 = tpu.matmul %351, %352, %cst_159 {dimension_numbers = #tpu.dot_dimension_numbers<[1], [0], [0], [1], [0, 0, 1, 1], [], []>} : vector<5x16xf32>, vector<16x64xf32>, vector<5x64xf32> -> vector<5x64xf32>
    %354 = arith.addf %334, %353 : vector<5x64xf32>
    %355 = vector.extract_strided_slice %291 {offsets = [0, 48], sizes = [5, 16], strides = [1, 1]} : vector<5x192xf32> to vector<5x16xf32>
    %356 = vector.extract_strided_slice %291 {offsets = [0, 112], sizes = [5, 16], strides = [1, 1]} : vector<5x192xf32> to vector<5x16xf32>
    %357 = vector.extract_strided_slice %291 {offsets = [0, 176], sizes = [5, 16], strides = [1, 1]} : vector<5x192xf32> to vector<5x16xf32>
    %cst_160 = arith.constant dense<0.000000e+00> : vector<5x5xf32>
    %358 = tpu.matmul %355, %356, %cst_160 {dimension_numbers = #tpu.dot_dimension_numbers<[1], [1], [0], [0], [0, 0, 1, 0], [], []>} : vector<5x16xf32>, vector<5x16xf32>, vector<5x5xf32> -> vector<5x5xf32>
    %cst_161 = arith.constant 2.500000e-01 : f32
    %359 = vector.broadcast %cst_161 : f32 to vector<5x5xf32>
    %360 = arith.mulf %358, %359 : vector<5x5xf32>
    %cst_162 = arith.constant dense<0xFF800000> : vector<5xf32>
    %361 = vector.multi_reduction <maximumf>, %360, %cst_162 [1] : vector<5x5xf32> to vector<5xf32>
    %362 = vector.shape_cast %361 : vector<5xf32> to vector<5x1xf32>
    %363 = vector.broadcast %362 : vector<5x1xf32> to vector<5x5xf32>
    %364 = arith.subf %360, %363 : vector<5x5xf32>
    %365 = math.exp %364 : vector<5x5xf32>
    %cst_163 = arith.constant dense<0.000000e+00> : vector<5xf32>
    %366 = vector.multi_reduction <add>, %365, %cst_163 [1] : vector<5x5xf32> to vector<5xf32>
    %367 = vector.shape_cast %366 : vector<5xf32> to vector<5x1xf32>
    %368 = tpu.reciprocal %367 {approx = true} : vector<5x1xf32> -> vector<5x1xf32>
    %369 = vector.broadcast %368 : vector<5x1xf32> to vector<5x5xf32>
    %370 = arith.mulf %365, %369 : vector<5x5xf32>
    %cst_164 = arith.constant dense<0.000000e+00> : vector<5x16xf32>
    %371 = tpu.matmul %370, %357, %cst_164 {dimension_numbers = #tpu.dot_dimension_numbers<[1], [0], [0], [1], [0, 0, 1, 1], [], []>} : vector<5x5xf32>, vector<5x16xf32>, vector<5x16xf32> -> vector<5x16xf32>
    %372 = vector.extract_strided_slice %293 {offsets = [48, 0], sizes = [16, 64], strides = [1, 1]} : vector<64x64xf32> to vector<16x64xf32>
    %cst_165 = arith.constant dense<0.000000e+00> : vector<5x64xf32>
    %373 = tpu.matmul %371, %372, %cst_165 {dimension_numbers = #tpu.dot_dimension_numbers<[1], [0], [0], [1], [0, 0, 1, 1], [], []>} : vector<5x16xf32>, vector<16x64xf32>, vector<5x64xf32> -> vector<5x64xf32>
    %374 = arith.addf %354, %373 : vector<5x64xf32>
    %375 = arith.addf %258, %374 : vector<5x64xf32>
    %c1_166 = arith.constant 1 : index
    %c0_167 = arith.constant 0 : index
    %c0_168 = arith.constant 0 : index
    %376 = vector.load %arg10[%c1_166, %c0_167, %c0_168] : memref<2x1x64xf32, #tpu.memory_space<vmem>>, vector<1x1x64xf32>
    %377 = vector.shape_cast %376 : vector<1x1x64xf32> to vector<1x64xf32>
    %378 = vector.broadcast %377 : vector<1x64xf32> to vector<5x64xf32>
    %379 = arith.addf %375, %378 : vector<5x64xf32>
    %c1_169 = arith.constant 1 : index
    %c0_170 = arith.constant 0 : index
    %c0_171 = arith.constant 0 : index
    %380 = vector.load %arg11[%c1_169, %c0_170, %c0_171] : memref<2x5x64xf32, #tpu.memory_space<vmem>>, vector<1x5x64xf32>
    %381 = vector.shape_cast %380 : vector<1x5x64xf32> to vector<5x64xf32>
    %c1_172 = arith.constant 1 : index
    %c0_173 = arith.constant 0 : index
    %c0_174 = arith.constant 0 : index
    %382 = vector.load %arg12[%c1_172, %c0_173, %c0_174] : memref<2x5x64xf32, #tpu.memory_space<vmem>>, vector<1x5x64xf32>
    %383 = vector.shape_cast %382 : vector<1x5x64xf32> to vector<5x64xf32>
    %cst_175 = arith.constant dense<0.000000e+00> : vector<5xf32>
    %384 = vector.multi_reduction <add>, %379, %cst_175 [1] : vector<5x64xf32> to vector<5xf32>
    %385 = vector.shape_cast %384 : vector<5xf32> to vector<5x1xf32>
    %cst_176 = arith.constant dense<0.000000e+00> : vector<1xf32>
    %386 = vector.multi_reduction <add>, %385, %cst_176 [0] : vector<5x1xf32> to vector<1xf32>
    %387 = vector.shape_cast %386 : vector<1xf32> to vector<1x1xf32>
    %cst_177 = arith.constant 3.125000e-03 : f32
    %388 = vector.broadcast %cst_177 : f32 to vector<1x1xf32>
    %389 = arith.mulf %387, %388 : vector<1x1xf32>
    %390 = vector.broadcast %389 : vector<1x1xf32> to vector<5x64xf32>
    %391 = arith.subf %379, %390 : vector<5x64xf32>
    %392 = arith.mulf %391, %391 : vector<5x64xf32>
    %cst_178 = arith.constant dense<0.000000e+00> : vector<5xf32>
    %393 = vector.multi_reduction <add>, %392, %cst_178 [1] : vector<5x64xf32> to vector<5xf32>
    %394 = vector.shape_cast %393 : vector<5xf32> to vector<5x1xf32>
    %cst_179 = arith.constant dense<0.000000e+00> : vector<1xf32>
    %395 = vector.multi_reduction <add>, %394, %cst_179 [0] : vector<5x1xf32> to vector<1xf32>
    %396 = vector.shape_cast %395 : vector<1xf32> to vector<1x1xf32>
    %cst_180 = arith.constant 3.125000e-03 : f32
    %397 = vector.broadcast %cst_180 : f32 to vector<1x1xf32>
    %398 = arith.mulf %396, %397 : vector<1x1xf32>
    %cst_181 = arith.constant 9.99999974E-6 : f32
    %399 = vector.broadcast %cst_181 : f32 to vector<1x1xf32>
    %400 = arith.addf %398, %399 : vector<1x1xf32>
    %401 = math.rsqrt %400 : vector<1x1xf32>
    %402 = vector.broadcast %401 : vector<1x1xf32> to vector<5x64xf32>
    %403 = arith.mulf %391, %402 : vector<5x64xf32>
    %404 = arith.mulf %403, %381 : vector<5x64xf32>
    %405 = arith.addf %404, %383 : vector<5x64xf32>
    %c1_182 = arith.constant 1 : index
    %c0_183 = arith.constant 0 : index
    %c0_184 = arith.constant 0 : index
    %406 = vector.load %arg13[%c1_182, %c0_183, %c0_184] : memref<2x64x64xf32, #tpu.memory_space<vmem>>, vector<1x64x64xf32>
    %407 = vector.shape_cast %406 : vector<1x64x64xf32> to vector<64x64xf32>
    %cst_185 = arith.constant dense<0.000000e+00> : vector<5x64xf32>
    %408 = tpu.matmul %405, %407, %cst_185 {dimension_numbers = #tpu.dot_dimension_numbers<[1], [0], [0], [1], [0, 0, 1, 1], [], []>} : vector<5x64xf32>, vector<64x64xf32>, vector<5x64xf32> -> vector<5x64xf32>
    %c1_186 = arith.constant 1 : index
    %c0_187 = arith.constant 0 : index
    %c0_188 = arith.constant 0 : index
    %409 = vector.load %arg14[%c1_186, %c0_187, %c0_188] : memref<2x1x64xf32, #tpu.memory_space<vmem>>, vector<1x1x64xf32>
    %410 = vector.shape_cast %409 : vector<1x1x64xf32> to vector<1x64xf32>
    %411 = vector.broadcast %410 : vector<1x64xf32> to vector<5x64xf32>
    %412 = arith.addf %408, %411 : vector<5x64xf32>
    %cst_189 = arith.constant 5.000000e-01 : f32
    %413 = vector.broadcast %cst_189 : f32 to vector<5x64xf32>
    %414 = arith.mulf %413, %412 : vector<5x64xf32>
    %cst_190 = arith.constant 0.707106769 : f32
    %415 = vector.broadcast %cst_190 : f32 to vector<5x64xf32>
    %416 = arith.mulf %412, %415 : vector<5x64xf32>
    %cst_191 = arith.constant 0.000000e+00 : f32
    %417 = vector.broadcast %cst_191 : f32 to vector<5x64xf32>
    %418 = arith.cmpf olt, %416, %417 : vector<5x64xf32>
    %cst_192 = arith.constant -1.000000e+00 : f32
    %cst_193 = arith.constant 1.000000e+00 : f32
    %419 = vector.broadcast %cst_192 : f32 to vector<5x64xf32>
    %420 = vector.broadcast %cst_193 : f32 to vector<5x64xf32>
    %421 = arith.select %418, %419, %420 : vector<5x64xi1>, vector<5x64xf32>
    %422 = math.absf %416 : vector<5x64xf32>
    %cst_194 = arith.constant 0.327591091 : f32
    %423 = vector.broadcast %cst_194 : f32 to vector<5x64xf32>
    %424 = arith.mulf %423, %422 : vector<5x64xf32>
    %cst_195 = arith.constant 1.000000e+00 : f32
    %425 = vector.broadcast %cst_195 : f32 to vector<5x64xf32>
    %426 = arith.addf %425, %424 : vector<5x64xf32>
    %cst_196 = arith.constant 1.000000e+00 : f32
    %427 = vector.broadcast %cst_196 : f32 to vector<5x64xf32>
    %428 = arith.divf %427, %426 : vector<5x64xf32>
    %cst_197 = arith.constant 1.06140542 : f32
    %429 = vector.broadcast %cst_197 : f32 to vector<5x64xf32>
    %430 = arith.mulf %429, %428 : vector<5x64xf32>
    %cst_198 = arith.constant -1.45315206 : f32
    %431 = vector.broadcast %cst_198 : f32 to vector<5x64xf32>
    %432 = arith.addf %430, %431 : vector<5x64xf32>
    %433 = arith.mulf %432, %428 : vector<5x64xf32>
    %cst_199 = arith.constant 1.42141378 : f32
    %434 = vector.broadcast %cst_199 : f32 to vector<5x64xf32>
    %435 = arith.addf %433, %434 : vector<5x64xf32>
    %436 = arith.mulf %435, %428 : vector<5x64xf32>
    %cst_200 = arith.constant -0.284496725 : f32
    %437 = vector.broadcast %cst_200 : f32 to vector<5x64xf32>
    %438 = arith.addf %436, %437 : vector<5x64xf32>
    %439 = arith.mulf %438, %428 : vector<5x64xf32>
    %cst_201 = arith.constant 0.254829586 : f32
    %440 = vector.broadcast %cst_201 : f32 to vector<5x64xf32>
    %441 = arith.addf %439, %440 : vector<5x64xf32>
    %442 = arith.mulf %441, %428 : vector<5x64xf32>
    %cst_202 = arith.constant 0.000000e+00 : f32
    %443 = vector.broadcast %cst_202 : f32 to vector<5x64xf32>
    %444 = arith.subf %443, %422 : vector<5x64xf32>
    %445 = arith.mulf %444, %422 : vector<5x64xf32>
    %446 = math.exp %445 : vector<5x64xf32>
    %447 = arith.mulf %442, %446 : vector<5x64xf32>
    %cst_203 = arith.constant 1.000000e+00 : f32
    %448 = vector.broadcast %cst_203 : f32 to vector<5x64xf32>
    %449 = arith.subf %448, %447 : vector<5x64xf32>
    %450 = arith.mulf %421, %449 : vector<5x64xf32>
    %cst_204 = arith.constant 1.000000e+00 : f32
    %451 = vector.broadcast %cst_204 : f32 to vector<5x64xf32>
    %452 = arith.addf %451, %450 : vector<5x64xf32>
    %453 = arith.mulf %414, %452 : vector<5x64xf32>
    %c1_205 = arith.constant 1 : index
    %c0_206 = arith.constant 0 : index
    %c0_207 = arith.constant 0 : index
    %454 = vector.load %arg15[%c1_205, %c0_206, %c0_207] : memref<2x64x64xf32, #tpu.memory_space<vmem>>, vector<1x64x64xf32>
    %455 = vector.shape_cast %454 : vector<1x64x64xf32> to vector<64x64xf32>
    %cst_208 = arith.constant dense<0.000000e+00> : vector<5x64xf32>
    %456 = tpu.matmul %453, %455, %cst_208 {dimension_numbers = #tpu.dot_dimension_numbers<[1], [0], [0], [1], [0, 0, 1, 1], [], []>} : vector<5x64xf32>, vector<64x64xf32>, vector<5x64xf32> -> vector<5x64xf32>
    %c1_209 = arith.constant 1 : index
    %c0_210 = arith.constant 0 : index
    %c0_211 = arith.constant 0 : index
    %457 = vector.load %arg16[%c1_209, %c0_210, %c0_211] : memref<2x1x64xf32, #tpu.memory_space<vmem>>, vector<1x1x64xf32>
    %458 = vector.shape_cast %457 : vector<1x1x64xf32> to vector<1x64xf32>
    %459 = vector.broadcast %458 : vector<1x64xf32> to vector<5x64xf32>
    %460 = arith.addf %456, %459 : vector<5x64xf32>
    %cst_212 = arith.constant 5.000000e-01 : f32
    %461 = vector.broadcast %cst_212 : f32 to vector<5x64xf32>
    %462 = arith.mulf %461, %460 : vector<5x64xf32>
    %cst_213 = arith.constant 0.707106769 : f32
    %463 = vector.broadcast %cst_213 : f32 to vector<5x64xf32>
    %464 = arith.mulf %460, %463 : vector<5x64xf32>
    %cst_214 = arith.constant 0.000000e+00 : f32
    %465 = vector.broadcast %cst_214 : f32 to vector<5x64xf32>
    %466 = arith.cmpf olt, %464, %465 : vector<5x64xf32>
    %cst_215 = arith.constant -1.000000e+00 : f32
    %cst_216 = arith.constant 1.000000e+00 : f32
    %467 = vector.broadcast %cst_215 : f32 to vector<5x64xf32>
    %468 = vector.broadcast %cst_216 : f32 to vector<5x64xf32>
    %469 = arith.select %466, %467, %468 : vector<5x64xi1>, vector<5x64xf32>
    %470 = math.absf %464 : vector<5x64xf32>
    %cst_217 = arith.constant 0.327591091 : f32
    %471 = vector.broadcast %cst_217 : f32 to vector<5x64xf32>
    %472 = arith.mulf %471, %470 : vector<5x64xf32>
    %cst_218 = arith.constant 1.000000e+00 : f32
    %473 = vector.broadcast %cst_218 : f32 to vector<5x64xf32>
    %474 = arith.addf %473, %472 : vector<5x64xf32>
    %cst_219 = arith.constant 1.000000e+00 : f32
    %475 = vector.broadcast %cst_219 : f32 to vector<5x64xf32>
    %476 = arith.divf %475, %474 : vector<5x64xf32>
    %cst_220 = arith.constant 1.06140542 : f32
    %477 = vector.broadcast %cst_220 : f32 to vector<5x64xf32>
    %478 = arith.mulf %477, %476 : vector<5x64xf32>
    %cst_221 = arith.constant -1.45315206 : f32
    %479 = vector.broadcast %cst_221 : f32 to vector<5x64xf32>
    %480 = arith.addf %478, %479 : vector<5x64xf32>
    %481 = arith.mulf %480, %476 : vector<5x64xf32>
    %cst_222 = arith.constant 1.42141378 : f32
    %482 = vector.broadcast %cst_222 : f32 to vector<5x64xf32>
    %483 = arith.addf %481, %482 : vector<5x64xf32>
    %484 = arith.mulf %483, %476 : vector<5x64xf32>
    %cst_223 = arith.constant -0.284496725 : f32
    %485 = vector.broadcast %cst_223 : f32 to vector<5x64xf32>
    %486 = arith.addf %484, %485 : vector<5x64xf32>
    %487 = arith.mulf %486, %476 : vector<5x64xf32>
    %cst_224 = arith.constant 0.254829586 : f32
    %488 = vector.broadcast %cst_224 : f32 to vector<5x64xf32>
    %489 = arith.addf %487, %488 : vector<5x64xf32>
    %490 = arith.mulf %489, %476 : vector<5x64xf32>
    %cst_225 = arith.constant 0.000000e+00 : f32
    %491 = vector.broadcast %cst_225 : f32 to vector<5x64xf32>
    %492 = arith.subf %491, %470 : vector<5x64xf32>
    %493 = arith.mulf %492, %470 : vector<5x64xf32>
    %494 = math.exp %493 : vector<5x64xf32>
    %495 = arith.mulf %490, %494 : vector<5x64xf32>
    %cst_226 = arith.constant 1.000000e+00 : f32
    %496 = vector.broadcast %cst_226 : f32 to vector<5x64xf32>
    %497 = arith.subf %496, %495 : vector<5x64xf32>
    %498 = arith.mulf %469, %497 : vector<5x64xf32>
    %cst_227 = arith.constant 1.000000e+00 : f32
    %499 = vector.broadcast %cst_227 : f32 to vector<5x64xf32>
    %500 = arith.addf %499, %498 : vector<5x64xf32>
    %501 = arith.mulf %462, %500 : vector<5x64xf32>
    %502 = arith.addf %379, %501 : vector<5x64xf32>
    %c0_228 = arith.constant 0 : index
    %c0_229 = arith.constant 0 : index
    %503 = vector.load %arg17[%c0_228, %c0_229] : memref<5x64xf32, #tpu.memory_space<vmem>>, vector<5x64xf32>
    %c0_230 = arith.constant 0 : index
    %c0_231 = arith.constant 0 : index
    %504 = vector.load %arg18[%c0_230, %c0_231] : memref<5x64xf32, #tpu.memory_space<vmem>>, vector<5x64xf32>
    %cst_232 = arith.constant dense<0.000000e+00> : vector<5xf32>
    %505 = vector.multi_reduction <add>, %502, %cst_232 [1] : vector<5x64xf32> to vector<5xf32>
    %506 = vector.shape_cast %505 : vector<5xf32> to vector<5x1xf32>
    %cst_233 = arith.constant dense<0.000000e+00> : vector<1xf32>
    %507 = vector.multi_reduction <add>, %506, %cst_233 [0] : vector<5x1xf32> to vector<1xf32>
    %508 = vector.shape_cast %507 : vector<1xf32> to vector<1x1xf32>
    %cst_234 = arith.constant 3.125000e-03 : f32
    %509 = vector.broadcast %cst_234 : f32 to vector<1x1xf32>
    %510 = arith.mulf %508, %509 : vector<1x1xf32>
    %511 = vector.broadcast %510 : vector<1x1xf32> to vector<5x64xf32>
    %512 = arith.subf %502, %511 : vector<5x64xf32>
    %513 = arith.mulf %512, %512 : vector<5x64xf32>
    %cst_235 = arith.constant dense<0.000000e+00> : vector<5xf32>
    %514 = vector.multi_reduction <add>, %513, %cst_235 [1] : vector<5x64xf32> to vector<5xf32>
    %515 = vector.shape_cast %514 : vector<5xf32> to vector<5x1xf32>
    %cst_236 = arith.constant dense<0.000000e+00> : vector<1xf32>
    %516 = vector.multi_reduction <add>, %515, %cst_236 [0] : vector<5x1xf32> to vector<1xf32>
    %517 = vector.shape_cast %516 : vector<1xf32> to vector<1x1xf32>
    %cst_237 = arith.constant 3.125000e-03 : f32
    %518 = vector.broadcast %cst_237 : f32 to vector<1x1xf32>
    %519 = arith.mulf %517, %518 : vector<1x1xf32>
    %cst_238 = arith.constant 9.99999974E-6 : f32
    %520 = vector.broadcast %cst_238 : f32 to vector<1x1xf32>
    %521 = arith.addf %519, %520 : vector<1x1xf32>
    %522 = math.rsqrt %521 : vector<1x1xf32>
    %523 = vector.broadcast %522 : vector<1x1xf32> to vector<5x64xf32>
    %524 = arith.mulf %512, %523 : vector<5x64xf32>
    %525 = arith.mulf %524, %503 : vector<5x64xf32>
    %526 = arith.addf %525, %504 : vector<5x64xf32>
    %527 = vector.extract_strided_slice %526 {offsets = [0, 0], sizes = [1, 64], strides = [1, 1]} : vector<5x64xf32> to vector<1x64xf32>
    %c0_239 = arith.constant 0 : index
    %c0_240 = arith.constant 0 : index
    %528 = vector.load %arg19[%c0_239, %c0_240] : memref<64x10xf32, #tpu.memory_space<vmem>>, vector<64x10xf32>
    %cst_241 = arith.constant dense<0.000000e+00> : vector<1x10xf32>
    %529 = tpu.matmul %527, %528, %cst_241 {dimension_numbers = #tpu.dot_dimension_numbers<[1], [0], [0], [1], [0, 0, 1, 1], [], []>} : vector<1x64xf32>, vector<64x10xf32>, vector<1x10xf32> -> vector<1x10xf32>
    %c0_242 = arith.constant 0 : index
    %c0_243 = arith.constant 0 : index
    %530 = vector.load %arg20[%c0_242, %c0_243] : memref<1x10xf32, #tpu.memory_space<vmem>>, vector<1x10xf32>
    %531 = arith.addf %529, %530 : vector<1x10xf32>
    %cst_244 = arith.constant dense<0xFF800000> : vector<1xf32>
    %532 = vector.multi_reduction <maximumf>, %531, %cst_244 [1] : vector<1x10xf32> to vector<1xf32>
    %533 = vector.shape_cast %532 : vector<1xf32> to vector<1x1xf32>
    %534 = vector.broadcast %533 : vector<1x1xf32> to vector<1x10xf32>
    %535 = arith.subf %531, %534 : vector<1x10xf32>
    %536 = math.exp %535 : vector<1x10xf32>
    %cst_245 = arith.constant dense<0.000000e+00> : vector<1xf32>
    %537 = vector.multi_reduction <add>, %536, %cst_245 [1] : vector<1x10xf32> to vector<1xf32>
    %538 = vector.shape_cast %537 : vector<1xf32> to vector<1x1xf32>
    %539 = vector.broadcast %538 : vector<1x1xf32> to vector<1x10xf32>
    %540 = arith.divf %536, %539 : vector<1x10xf32>
    %c0_246 = arith.constant 0 : index
    %c0_247 = arith.constant 0 : index
    %541 = vector.load %arg21[%c0_246, %c0_247] : memref<1x10xf32, #tpu.memory_space<vmem>>, vector<1x10xf32>
    tpu.vector_store %arg21[%c0_246, %c0_247], %540 {strides = array<i32>} : memref<1x10xf32, #tpu.memory_space<vmem>>, vector<1x10xf32>,
    return
  }
}

</mosaic_0001>

<llo_original>
// kernel: vision_transformer.1
$region0: #{vision_transformer.1}
  #allocation0 [shape = 'u32[]', space=smem, size = 0x4, offset = 0x4, fixed_abs, tag = 'smem constant byte address 0x4 - core index']
  #allocation1 [shape = 'u32[72,128]{1,0:T(1,128)}', space=vmem, size = 0x9000, scoped, tag = 'internal scratch']
  %s0 = inlined_call_operand.vmem [shape: f32[5,192], index: 0, kind: input, shape index: {}]
  %s1 = inlined_call_operand.vmem [shape: f32[192,64], index: 1, kind: input, shape index: {}]
  %s2 = inlined_call_operand.vmem [shape: f32[1,64], index: 2, kind: input, shape index: {}]
  %s3 = inlined_call_operand.vmem [shape: f32[1,64], index: 3, kind: input, shape index: {}]
  %s4 = inlined_call_operand.vmem [shape: f32[5,64], index: 4, kind: input, shape index: {}]
  %s5 = inlined_call_operand.vmem [shape: f32[2,5,64], index: 5, kind: input, shape index: {}]
  %s6 = inlined_call_operand.vmem [shape: f32[2,5,64], index: 6, kind: input, shape index: {}]
  %s7 = inlined_call_operand.vmem [shape: f32[2,64,192], index: 7, kind: input, shape index: {}]
  %s8 = inlined_call_operand.vmem [shape: f32[2,1,192], index: 8, kind: input, shape index: {}]
  %s9 = inlined_call_operand.vmem [shape: f32[2,64,64], index: 9, kind: input, shape index: {}]
  %s10 = inlined_call_operand.vmem [shape: f32[2,1,64], index: 10, kind: input, shape index: {}]
  %s11 = inlined_call_operand.vmem [shape: f32[2,5,64], index: 11, kind: input, shape index: {}]
  %s12 = inlined_call_operand.vmem [shape: f32[2,5,64], index: 12, kind: input, shape index: {}]
  %s13 = inlined_call_operand.vmem [shape: f32[2,64,64], index: 13, kind: input, shape index: {}]
  %s14 = inlined_call_operand.vmem [shape: f32[2,1,64], index: 14, kind: input, shape index: {}]
  %s15 = inlined_call_operand.vmem [shape: f32[2,64,64], index: 15, kind: input, shape index: {}]
  %s16 = inlined_call_operand.vmem [shape: f32[2,1,64], index: 16, kind: input, shape index: {}]
  %s17 = inlined_call_operand.vmem [shape: f32[5,64], index: 17, kind: input, shape index: {}]
  %s18 = inlined_call_operand.vmem [shape: f32[5,64], index: 18, kind: input, shape index: {}]
  %s19 = inlined_call_operand.vmem [shape: f32[64,10], index: 19, kind: input, shape index: {}]
  %s20 = inlined_call_operand.vmem [shape: f32[1,10], index: 20, kind: input, shape index: {}]
  %s21 = inlined_call_operand.hbm [shape: f32[1,10], index: 21, kind: output, shape index: {}]
  %s22 = sld [smem:[#allocation0]]
  $region94: #{vision_transformer.1} parent=0
    _
  %s24 = ssub.s32 1, %s22
  %s25 = scalar_select 0, %s24, %s22
  $region1: #{vision_transformer.1} parent=0
    #allocation2 [shape = 'u8[512]{0}', space=vmem, size = 0x400, scoped, tag = 'output window, operand 0, single buffered']
    #allocation3 [shape = 's32[1]{0}', space=sflag, size = 0x4, scoped, tag = 'scoped memory for vision_transformer.1']
    %26 = vsyncpa [#allocation3], 0
    // Predicated region
    $region2: #{vision_transformer.1} parent=1 // pred_check
      _
    $region3: #{vision_transformer.1} parent=1 // pred_check_branch
      %28 = sbr.rel (0) target = $region5
    $region4: #{vision_transformer.1} parent=1 // pred_region
      _
    $region5: #{vision_transformer.1} parent=1 // pred_fallthru
      _
    // Predicated region
    $region6: #{vision_transformer.1} parent=1 // pred_check
      _
    $region7: #{vision_transformer.1} parent=1 // pred_check_branch
      %30 = sbr.rel (0) target = $region9
    $region8: #{vision_transformer.1} parent=1 // pred_region
      _
    $region9: #{vision_transformer.1} parent=1 // pred_fallthru
      _
    // Predicated region
    $region10: #{vision_transformer.1} parent=1 // pred_check
      _
    $region11: #{vision_transformer.1} parent=1 // pred_check_branch
      %32 = sbr.rel (0) target = $region13
    $region12: #{vision_transformer.1} parent=1 // pred_region
      _
    $region13: #{vision_transformer.1} parent=1 // pred_fallthru
      _
    // Predicated region
    $region14: #{vision_transformer.1} parent=1 // pred_check
      _
    $region15: #{vision_transformer.1} parent=1 // pred_check_branch
      %34 = sbr.rel (0) target = $region17
    $region16: #{vision_transformer.1} parent=1 // pred_region
      _
    $region17: #{vision_transformer.1} parent=1 // pred_fallthru
      _
    // Predicated region
    $region18: #{vision_transformer.1} parent=1 // pred_check
      _
    $region19: #{vision_transformer.1} parent=1 // pred_check_branch
      %36 = sbr.rel (0) target = $region21
    $region20: #{vision_transformer.1} parent=1 // pred_region
      _
    $region21: #{vision_transformer.1} parent=1 // pred_fallthru
      _
    // Predicated region
    $region22: #{vision_transformer.1} parent=1 // pred_check
      _
    $region23: #{vision_transformer.1} parent=1 // pred_check_branch
      %38 = sbr.rel (0) target = $region25
    $region24: #{vision_transformer.1} parent=1 // pred_region
      _
    $region25: #{vision_transformer.1} parent=1 // pred_fallthru
      _
    // Predicated region
    $region26: #{vision_transformer.1} parent=1 // pred_check
      _
    $region27: #{vision_transformer.1} parent=1 // pred_check_branch
      %40 = sbr.rel (0) target = $region29
    $region28: #{vision_transformer.1} parent=1 // pred_region
      _
    $region29: #{vision_transformer.1} parent=1 // pred_fallthru
      _
    // Predicated region
    $region30: #{vision_transformer.1} parent=1 // pred_check
      _
    $region31: #{vision_transformer.1} parent=1 // pred_check_branch
      %42 = sbr.rel (0) target = $region33
    $region32: #{vision_transformer.1} parent=1 // pred_region
      _
    $region33: #{vision_transformer.1} parent=1 // pred_fallthru
      _
    // Predicated region
    $region34: #{vision_transformer.1} parent=1 // pred_check
      _
    $region35: #{vision_transformer.1} parent=1 // pred_check_branch
      %44 = sbr.rel (0) target = $region37
    $region36: #{vision_transformer.1} parent=1 // pred_region
      _
    $region37: #{vision_transformer.1} parent=1 // pred_fallthru
      _
    // Predicated region
    $region38: #{vision_transformer.1} parent=1 // pred_check
      _
    $region39: #{vision_transformer.1} parent=1 // pred_check_branch
      %46 = sbr.rel (0) target = $region41
    $region40: #{vision_transformer.1} parent=1 // pred_region
      _
    $region41: #{vision_transformer.1} parent=1 // pred_fallthru
      _
    // Predicated region
    $region42: #{vision_transformer.1} parent=1 // pred_check
      _
    $region43: #{vision_transformer.1} parent=1 // pred_check_branch
      %48 = sbr.rel (0) target = $region45
    $region44: #{vision_transformer.1} parent=1 // pred_region
      _
    $region45: #{vision_transformer.1} parent=1 // pred_fallthru
      _
    // Predicated region
    $region46: #{vision_transformer.1} parent=1 // pred_check
      _
    $region47: #{vision_transformer.1} parent=1 // pred_check_branch
      %50 = sbr.rel (0) target = $region49
    $region48: #{vision_transformer.1} parent=1 // pred_region
      _
    $region49: #{vision_transformer.1} parent=1 // pred_fallthru
      _
    // Predicated region
    $region50: #{vision_transformer.1} parent=1 // pred_check
      _
    $region51: #{vision_transformer.1} parent=1 // pred_check_branch
      %52 = sbr.rel (0) target = $region53
    $region52: #{vision_transformer.1} parent=1 // pred_region
      _
    $region53: #{vision_transformer.1} parent=1 // pred_fallthru
      _
    // Predicated region
    $region54: #{vision_transformer.1} parent=1 // pred_check
      _
    $region55: #{vision_transformer.1} parent=1 // pred_check_branch
      %54 = sbr.rel (0) target = $region57
    $region56: #{vision_transformer.1} parent=1 // pred_region
      _
    $region57: #{vision_transformer.1} parent=1 // pred_fallthru
      _
    // Predicated region
    $region58: #{vision_transformer.1} parent=1 // pred_check
      _
    $region59: #{vision_transformer.1} parent=1 // pred_check_branch
      %56 = sbr.rel (0) target = $region61
    $region60: #{vision_transformer.1} parent=1 // pred_region
      _
    $region61: #{vision_transformer.1} parent=1 // pred_fallthru
      _
    // Predicated region
    $region62: #{vision_transformer.1} parent=1 // pred_check
      _
    $region63: #{vision_transformer.1} parent=1 // pred_check_branch
      %58 = sbr.rel (0) target = $region65
    $region64: #{vision_transformer.1} parent=1 // pred_region
      _
    $region65: #{vision_transformer.1} parent=1 // pred_fallthru
      _
    // Predicated region
    $region66: #{vision_transformer.1} parent=1 // pred_check
      _
    $region67: #{vision_transformer.1} parent=1 // pred_check_branch
      %60 = sbr.rel (0) target = $region69
    $region68: #{vision_transformer.1} parent=1 // pred_region
      _
    $region69: #{vision_transformer.1} parent=1 // pred_fallthru
      _
    // Predicated region
    $region70: #{vision_transformer.1} parent=1 // pred_check
      _
    $region71: #{vision_transformer.1} parent=1 // pred_check_branch
      %62 = sbr.rel (0) target = $region73
    $region72: #{vision_transformer.1} parent=1 // pred_region
      _
    $region73: #{vision_transformer.1} parent=1 // pred_fallthru
      _
    // Predicated region
    $region74: #{vision_transformer.1} parent=1 // pred_check
      _
    $region75: #{vision_transformer.1} parent=1 // pred_check_branch
      %64 = sbr.rel (0) target = $region77
    $region76: #{vision_transformer.1} parent=1 // pred_region
      _
    $region77: #{vision_transformer.1} parent=1 // pred_fallthru
      _
    // Predicated region
    $region78: #{vision_transformer.1} parent=1 // pred_check
      _
    $region79: #{vision_transformer.1} parent=1 // pred_check_branch
      %66 = sbr.rel (0) target = $region81
    $region80: #{vision_transformer.1} parent=1 // pred_region
      _
    $region81: #{vision_transformer.1} parent=1 // pred_fallthru
      _
    // Predicated region
    $region82: #{vision_transformer.1} parent=1 // pred_check
      _
    $region83: #{vision_transformer.1} parent=1 // pred_check_branch
      %68 = sbr.rel (0) target = $region85
    $region84: #{vision_transformer.1} parent=1 // pred_region
      _
    $region85: #{vision_transformer.1} parent=1 // pred_fallthru
      _
    %v69 = vld [vmem:[%s0] sm:$0x1f]
    %v70 = vld [vmem:[%s0 + $0x8] sm:$0x1f]
    %v71 = vld [vmem:[%s1] sm:$0xff]
    %v72 = vld [vmem:[%s1 + $0x8] sm:$0xff]
    %v73 = vld [vmem:[%s1 + $0x10] sm:$0xff]
    %v74 = vld [vmem:[%s1 + $0x18] sm:$0xff]
    %v75 = vld [vmem:[%s1 + $0x20] sm:$0xff]
    %v76 = vld [vmem:[%s1 + $0x28] sm:$0xff]
    %v77 = vld [vmem:[%s1 + $0x30] sm:$0xff]
    %v78 = vld [vmem:[%s1 + $0x38] sm:$0xff]
    %v79 = vld [vmem:[%s1 + $0x40] sm:$0xff]
    %v80 = vld [vmem:[%s1 + $0x48] sm:$0xff]
    %v81 = vld [vmem:[%s1 + $0x50] sm:$0xff]
    %v82 = vld [vmem:[%s1 + $0x58] sm:$0xff]
    %v83 = vld [vmem:[%s1 + $0x60] sm:$0xff]
    %v84 = vld [vmem:[%s1 + $0x68] sm:$0xff]
    %v85 = vld [vmem:[%s1 + $0x70] sm:$0xff]
    %v86 = vld [vmem:[%s1 + $0x78] sm:$0xff]
    %v87 = vld [vmem:[%s1 + $0x80] sm:$0xff]
    %v88 = vld [vmem:[%s1 + $0x88] sm:$0xff]
    %v89 = vld [vmem:[%s1 + $0x90] sm:$0xff]
    %v90 = vld [vmem:[%s1 + $0x98] sm:$0xff]
    %v91 = vld [vmem:[%s1 + $0xa0] sm:$0xff]
    %v92 = vld [vmem:[%s1 + $0xa8] sm:$0xff]
    %v93 = vld [vmem:[%s1 + $0xb0] sm:$0xff]
    %v94 = vld [vmem:[%s1 + $0xb8] sm:$0xff]
    %v95 = vld [vmem:[%s2] sm:$0x1]
    %v97 = vperm.slane %v95, 0
    %vm99 = vcmask 523264
    %v101 = vsel %vm99, %v70, 0
    %103 = vmatpush.msra.mxu0 %v86
    %104 = vmatpush.msra.mxu0 %v85
    %105 = vmatpush.msra.mxu0 %v84
    %106 = vmatpush.msra.mxu0 %v83
    %107 = vmatpush.msra.mxu0 %v82
    %108 = vmatpush.msra.mxu0 %v81
    %109 = vmatpush.msra.mxu0 %v80
    %110 = vmatpush.msra.mxu0 %v79
    %111 = vmatpush.msra.mxu0 %v78
    %112 = vmatpush.msra.mxu0 %v77
    %113 = vmatpush.msra.mxu0 %v76
    %114 = vmatpush.msra.mxu0 %v75
    %115 = vmatpush.msra.mxu0 %v74
    %116 = vmatpush.msra.mxu0 %v73
    %117 = vmatpush.msra.mxu0 %v72
    %118 = vmatpush.msra.mxu0 %v71
    %119 = vmatmul.f32.gmra.mxu0 %v69
    %v120 = vpop.f32.mrf.mxu0
    %v121 = vadd.f32 %v97, %v120
    %122 = vdwg.mxu0
    %123 = vmatpush.msra.mxu0 0.0
    %124 = vmatpush.msra.mxu0 0.0
    %125 = vmatpush.msra.mxu0 0.0
    %126 = vmatpush.msra.mxu0 0.0
    %127 = vmatpush.msra.mxu0 0.0
    %128 = vmatpush.msra.mxu0 0.0
    %129 = vmatpush.msra.mxu0 0.0
    %130 = vmatpush.msra.mxu0 0.0
    %131 = vmatpush.msra.mxu0 %v94
    %132 = vmatpush.msra.mxu0 %v93
    %133 = vmatpush.msra.mxu0 %v92
    %134 = vmatpush.msra.mxu0 %v91
    %135 = vmatpush.msra.mxu0 %v90
    %136 = vmatpush.msra.mxu0 %v89
    %137 = vmatpush.msra.mxu0 %v88
    %138 = vmatpush.msra.mxu0 %v87
    %139 = vmatmul.f32.gmra.mxu0 %v101
    %v140 = vpop.f32.mrf.mxu0
    %v141 = vadd.f32 %v121, %v140
    %142 = vdwg.mxu0
    %v143 = vlaneseq
    %v144 = vshrl.u32 %v143, 7
    %v145 = vld [vmem:[%s3] sm:$0x1]
    %v147 = vperm.slane %v145, 0
    %vm149 = vcmp.eq.s32.totalorder %v144, 0
    %v150 = vsel %vm149, %v147, %v141
    %v151 = vld [vmem:[%s4] sm:$0x1f]
    %v152 = vadd.f32 %v150, %v151
    %v153 = vld [vmem:[%s5] sm:$0x1f]
    %v154 = vld [vmem:[%s6] sm:$0x1f]
    %vm155 = vcmask 520192
    %v156 = vsel %vm155, %v152, 0.0
    %157 = vadd.xlane.f32.xlu0 %v156
    %v158 = vpop.xlane.xlu0 %157
    %vm159 = vcmask 1044480
    %v160 = vsel %vm159, %v158, 0.0
    %v161 = vrot.slane %v160, 4
    %v162 = vadd.f32 %v160, %v161
    %v163 = vrot.slane %v162, 2
    %v164 = vadd.f32 %v162, %v163
    %v165 = vrot.slane %v164, 1
    %v166 = vadd.f32 %v164, %v165
    %v167 = vmul.f32 %v166, 0.003125
    %v168 = vsub.f32 %v152, %v167
    %v169 = vmul.f32 %v168, %v168
    %v170 = vsel %vm155, %v169, 0.0
    %171 = vadd.xlane.f32.xlu0 %v170
    %v172 = vpop.xlane.xlu0 %171
    %v173 = vsel %vm159, %v172, 0.0
    %v174 = vrot.slane %v173, 4
    %v175 = vadd.f32 %v173, %v174
    %v176 = vrot.slane %v175, 2
    %v177 = vadd.f32 %v175, %v176
    %v178 = vrot.slane %v177, 1
    %v179 = vadd.f32 %v177, %v178
    %v180 = vmul.f32 %v179, 0.003125
    %v181 = vadd.f32 %v180, 1e-05
    %v182 = vrsqrt.pop %v181
    %v183 = vmul.f32 %v182, %v181
    %v184 = vmul.f32 %v183, %v182
    %v185 = vmul.f32 0.5, %v184
    %v186 = vsub.f32 1.5, %v185
    %v187 = vmul.f32 %v182, %v186
    %vm188 = vweird.f32 %v181
    %vm189 = vweird.f32 %v182
    %vm190 = vmor %vm188, %vm189
    %v191 = vsel %vm190, %v182, %v187
    %v192 = vmul.f32 %v168, %v191
    %v193 = vmul.f32 %v192, %v153
    %v194 = vadd.f32 %v193, %v154
    %v195 = vld [vmem:[%s7] sm:$0xff]
    %v196 = vld [vmem:[%s7 + $0x8] sm:$0xff]
    %v197 = vld [vmem:[%s7 + $0x10] sm:$0xff]
    %v198 = vld [vmem:[%s7 + $0x18] sm:$0xff]
    %v199 = vld [vmem:[%s7 + $0x20] sm:$0xff]
    %v200 = vld [vmem:[%s7 + $0x28] sm:$0xff]
    %v201 = vld [vmem:[%s7 + $0x30] sm:$0xff]
    %v202 = vld [vmem:[%s7 + $0x38] sm:$0xff]
    %v203 = vld [vmem:[%s7 + $0x40] sm:$0xff]
    %v204 = vld [vmem:[%s7 + $0x48] sm:$0xff]
    %v205 = vld [vmem:[%s7 + $0x50] sm:$0xff]
    %v206 = vld [vmem:[%s7 + $0x58] sm:$0xff]
    %v207 = vld [vmem:[%s7 + $0x60] sm:$0xff]
    %v208 = vld [vmem:[%s7 + $0x68] sm:$0xff]
    %v209 = vld [vmem:[%s7 + $0x70] sm:$0xff]
    %v210 = vld [vmem:[%s7 + $0x78] sm:$0xff]
    %v211 = vld [vmem:[%s8] sm:$0x3]
    %v213 = vperm.slane %v211, 0
    %v214 = vperm.slane %v211, 1
    %v218 = vsel %vm99, %v194, 0
    %220 = vmatpush.msra.mxu0 0.0
    %221 = vmatpush.msra.mxu0 0.0
    %222 = vmatpush.msra.mxu0 0.0
    %223 = vmatpush.msra.mxu0 0.0
    %224 = vmatpush.msra.mxu0 0.0
    %225 = vmatpush.msra.mxu0 0.0
    %226 = vmatpush.msra.mxu0 0.0
    %227 = vmatpush.msra.mxu0 0.0
    %228 = vmatpush.msra.mxu0 %v209
    %229 = vmatpush.msra.mxu0 %v207
    %230 = vmatpush.msra.mxu0 %v205
    %231 = vmatpush.msra.mxu0 %v203
    %232 = vmatpush.msra.mxu0 %v201
    %233 = vmatpush.msra.mxu0 %v199
    %234 = vmatpush.msra.mxu0 %v197
    %235 = vmatpush.msra.mxu0 %v195
    %236 = vmatmul.f32.gmra.mxu0 %v218
    %v237 = vpop.f32.mrf.mxu0
    %v238 = vadd.f32 %v213, %v237
    %239 = vdwg.mxu0
    %240 = vmatpush.msra.mxu0 0.0
    %241 = vmatpush.msra.mxu0 0.0
    %242 = vmatpush.msra.mxu0 0.0
    %243 = vmatpush.msra.mxu0 0.0
    %244 = vmatpush.msra.mxu0 0.0
    %245 = vmatpush.msra.mxu0 0.0
    %246 = vmatpush.msra.mxu0 0.0
    %247 = vmatpush.msra.mxu0 0.0
    %248 = vmatpush.msra.mxu0 %v210
    %249 = vmatpush.msra.mxu0 %v208
    %250 = vmatpush.msra.mxu0 %v206
    %251 = vmatpush.msra.mxu0 %v204
    %252 = vmatpush.msra.mxu0 %v202
    %253 = vmatpush.msra.mxu0 %v200
    %254 = vmatpush.msra.mxu0 %v198
    %255 = vmatpush.msra.mxu0 %v196
    %256 = vmatmul.f32.gmra.mxu0 %v218
    %v257 = vpop.f32.mrf.mxu0
    %v258 = vadd.f32 %v214, %v257
    %259 = vdwg.mxu0
    %v260 = vld [vmem:[%s9] sm:$0xff]
    %v261 = vld [vmem:[%s9 + $0x8] sm:$0xff]
    %v262 = vld [vmem:[%s9 + $0x10] sm:$0xff]
    %v263 = vld [vmem:[%s9 + $0x18] sm:$0xff]
    %v264 = vld [vmem:[%s9 + $0x20] sm:$0xff]
    %v265 = vld [vmem:[%s9 + $0x28] sm:$0xff]
    %v266 = vld [vmem:[%s9 + $0x30] sm:$0xff]
    %v267 = vld [vmem:[%s9 + $0x38] sm:$0xff]
    %269 = vrot.lane.b32.xlu0 %v238, 64
    %v270 = vpop.permute.xlu0 %269
    %vm271 = vcmask 130048
    %v272 = vsel %vm271, %v238, 0
    %v274 = vsel %vm271, %v270, 0
    %276 = vmatpush.xpose.msra.mxu0 0.0
    %277 = vmatpush.xpose.msra.mxu0 0.0
    %278 = vmatpush.xpose.msra.mxu0 0.0
    %279 = vmatpush.xpose.msra.mxu0 0.0
    %280 = vmatpush.xpose.msra.mxu0 0.0
    %281 = vmatpush.xpose.msra.mxu0 0.0
    %282 = vmatpush.xpose.msra.mxu0 0.0
    %283 = vmatpush.xpose.msra.mxu0 0.0
    %284 = vmatpush.xpose.msra.mxu0 0.0
    %285 = vmatpush.xpose.msra.mxu0 0.0
    %286 = vmatpush.xpose.msra.mxu0 0.0
    %287 = vmatpush.xpose.msra.mxu0 0.0
    %288 = vmatpush.xpose.msra.mxu0 0.0
    %289 = vmatpush.xpose.msra.mxu0 0.0
    %290 = vmatpush.xpose.msra.mxu0 0.0
    %291 = vmatpush.xpose.msra.mxu0 %v274
    %292 = vmatmul.f32.gmra.mxu0 %v272
    %v293 = vpop.f32.mrf.mxu0
    %v294 = vadd.f32 0.0, %v293
    %295 = vdwg.mxu0
    %v296 = vmul.f32 %v294, 0.25
    %vm297 = vcmask 36864
    %v298 = vsel %vm297, %v296, -inf
    %299 = vmax.xlane.f32.xlu0 %v298
    %v300 = vpop.xlane.xlu0 %299
    %v301 = vsub.f32 %v296, %v300
    %v302 = vmul.f32 %v301, 1.442695
    %v303 = vpow.pop %v302
    %v304 = vsel %vm297, %v303, 0.0
    %305 = vadd.xlane.f32.xlu0 %v304
    %v306 = vpop.xlane.xlu0 %305
    %v307 = vrcp.pop %v306
    %v308 = vmul.f32 %v303, %v307
    %vm309 = vcmask 39936
    %v311 = vsel %vm309, %v308, 0
    %v314 = vsel %vm159, %v258, 0
    %316 = vmatpush.msra.mxu0 0.0
    %317 = vmatpush.msra.mxu0 0.0
    %318 = vmatpush.msra.mxu0 0.0
    %319 = vmatpush.msra.mxu0 0.0
    %320 = vmatpush.msra.mxu0 0.0
    %321 = vmatpush.msra.mxu0 0.0
    %322 = vmatpush.msra.mxu0 0.0
    %323 = vmatpush.msra.mxu0 0.0
    %324 = vmatpush.msra.mxu0 0.0
    %325 = vmatpush.msra.mxu0 0.0
    %326 = vmatpush.msra.mxu0 0.0
    %327 = vmatpush.msra.mxu0 0.0
    %328 = vmatpush.msra.mxu0 0.0
    %329 = vmatpush.msra.mxu0 0.0
    %330 = vmatpush.msra.mxu0 0.0
    %331 = vmatpush.msra.mxu0 %v314
    %332 = vmatmul.f32.gmra.mxu0 %v311
    %v333 = vpop.f32.mrf.mxu0
    %v334 = vadd.f32 0.0, %v333
    %335 = vdwg.mxu0
    %336 = vrot.lane.b32.xlu0 %v238, 112
    %v337 = vpop.permute.xlu0 %336
    %338 = vrot.lane.b32.xlu0 %v238, 48
    %v339 = vpop.permute.xlu0 %338
    %v340 = vsel %vm271, %v337, 0
    %v342 = vsel %vm271, %v339, 0
    %344 = vmatpush.xpose.msra.mxu0 0.0
    %345 = vmatpush.xpose.msra.mxu0 0.0
    %346 = vmatpush.xpose.msra.mxu0 0.0
    %347 = vmatpush.xpose.msra.mxu0 0.0
    %348 = vmatpush.xpose.msra.mxu0 0.0
    %349 = vmatpush.xpose.msra.mxu0 0.0
    %350 = vmatpush.xpose.msra.mxu0 0.0
    %351 = vmatpush.xpose.msra.mxu0 0.0
    %352 = vmatpush.xpose.msra.mxu0 0.0
    %353 = vmatpush.xpose.msra.mxu0 0.0
    %354 = vmatpush.xpose.msra.mxu0 0.0
    %355 = vmatpush.xpose.msra.mxu0 0.0
    %356 = vmatpush.xpose.msra.mxu0 0.0
    %357 = vmatpush.xpose.msra.mxu0 0.0
    %358 = vmatpush.xpose.msra.mxu0 0.0
    %359 = vmatpush.xpose.msra.mxu0 %v342
    %360 = vmatmul.f32.gmra.mxu0 %v340
    %v361 = vpop.f32.mrf.mxu0
    %v362 = vadd.f32 0.0, %v361
    %363 = vdwg.mxu0
    %v364 = vmul.f32 %v362, 0.25
    %v365 = vsel %vm297, %v364, -inf
    %366 = vmax.xlane.f32.xlu0 %v365
    %v367 = vpop.xlane.xlu0 %366
    %v368 = vsub.f32 %v364, %v367
    %v369 = vmul.f32 %v368, 1.442695
    %v370 = vpow.pop %v369
    %v371 = vsel %vm297, %v370, 0.0
    %372 = vadd.xlane.f32.xlu0 %v371
    %v373 = vpop.xlane.xlu0 %372
    %v374 = vrcp.pop %v373
    %v375 = vmul.f32 %v370, %v374
    %376 = vrot.lane.b32.xlu0 %v258, 112
    %v377 = vpop.permute.xlu0 %376
    %v379 = vsel %vm309, %v375, 0
    %v381 = vsel %vm159, %v377, 0
    %383 = vmatpush.msra.mxu0 0.0
    %384 = vmatpush.msra.mxu0 0.0
    %385 = vmatpush.msra.mxu0 0.0
    %386 = vmatpush.msra.mxu0 0.0
    %387 = vmatpush.msra.mxu0 0.0
    %388 = vmatpush.msra.mxu0 0.0
    %389 = vmatpush.msra.mxu0 0.0
    %390 = vmatpush.msra.mxu0 0.0
    %391 = vmatpush.msra.mxu0 0.0
    %392 = vmatpush.msra.mxu0 0.0
    %393 = vmatpush.msra.mxu0 0.0
    %394 = vmatpush.msra.mxu0 0.0
    %395 = vmatpush.msra.mxu0 0.0
    %396 = vmatpush.msra.mxu0 0.0
    %397 = vmatpush.msra.mxu0 0.0
    %398 = vmatpush.msra.mxu0 %v381
    %399 = vmatmul.f32.gmra.mxu0 %v379
    %v400 = vpop.f32.mrf.mxu0
    %v401 = vadd.f32 0.0, %v400
    %402 = vdwg.mxu0
    %v404 = vsel %vm271, %v401, 0
    %406 = vmatpush.msra.mxu0 0.0
    %407 = vmatpush.msra.mxu0 0.0
    %408 = vmatpush.msra.mxu0 0.0
    %409 = vmatpush.msra.mxu0 0.0
    %410 = vmatpush.msra.mxu0 0.0
    %411 = vmatpush.msra.mxu0 0.0
    %412 = vmatpush.msra.mxu0 0.0
    %413 = vmatpush.msra.mxu0 0.0
    %414 = vmatpush.msra.mxu0 0.0
    %415 = vmatpush.msra.mxu0 0.0
    %416 = vmatpush.msra.mxu0 0.0
    %417 = vmatpush.msra.mxu0 0.0
    %418 = vmatpush.msra.mxu0 0.0
    %419 = vmatpush.msra.mxu0 0.0
    %420 = vmatpush.msra.mxu0 %v263
    %421 = vmatpush.msra.mxu0 %v262
    %422 = vmatmul.f32.gmra.mxu0 %v404
    %v423 = vpop.f32.mrf.mxu0
    %v424 = vadd.f32 0.0, %v423
    %425 = vdwg.mxu0
    %v427 = vsel %vm271, %v334, 0
    %429 = vmatpush.msra.mxu0 0.0
    %430 = vmatpush.msra.mxu0 0.0
    %431 = vmatpush.msra.mxu0 0.0
    %432 = vmatpush.msra.mxu0 0.0
    %433 = vmatpush.msra.mxu0 0.0
    %434 = vmatpush.msra.mxu0 0.0
    %435 = vmatpush.msra.mxu0 0.0
    %436 = vmatpush.msra.mxu0 0.0
    %437 = vmatpush.msra.mxu0 0.0
    %438 = vmatpush.msra.mxu0 0.0
    %439 = vmatpush.msra.mxu0 0.0
    %440 = vmatpush.msra.mxu0 0.0
    %441 = vmatpush.msra.mxu0 0.0
    %442 = vmatpush.msra.mxu0 0.0
    %443 = vmatpush.msra.mxu0 %v261
    %444 = vmatpush.msra.mxu0 %v260
    %445 = vmatmul.f32.gmra.mxu0 %v427
    %v446 = vpop.f32.mrf.mxu0
    %v447 = vadd.f32 %v424, %v446
    %448 = vdwg.mxu0
    %449 = vrot.lane.b32.xlu0 %v238, 96
    %v450 = vpop.permute.xlu0 %449
    %451 = vrot.lane.b32.xlu0 %v238, 32
    %v452 = vpop.permute.xlu0 %451
    %v453 = vsel %vm271, %v450, 0
    %v455 = vsel %vm271, %v452, 0
    %457 = vmatpush.xpose.msra.mxu0 0.0
    %458 = vmatpush.xpose.msra.mxu0 0.0
    %459 = vmatpush.xpose.msra.mxu0 0.0
    %460 = vmatpush.xpose.msra.mxu0 0.0
    %461 = vmatpush.xpose.msra.mxu0 0.0
    %462 = vmatpush.xpose.msra.mxu0 0.0
    %463 = vmatpush.xpose.msra.mxu0 0.0
    %464 = vmatpush.xpose.msra.mxu0 0.0
    %465 = vmatpush.xpose.msra.mxu0 0.0
    %466 = vmatpush.xpose.msra.mxu0 0.0
    %467 = vmatpush.xpose.msra.mxu0 0.0
    %468 = vmatpush.xpose.msra.mxu0 0.0
    %469 = vmatpush.xpose.msra.mxu0 0.0
    %470 = vmatpush.xpose.msra.mxu0 0.0
    %471 = vmatpush.xpose.msra.mxu0 0.0
    %472 = vmatpush.xpose.msra.mxu0 %v455
    %473 = vmatmul.f32.gmra.mxu0 %v453
    %v474 = vpop.f32.mrf.mxu0
    %v475 = vadd.f32 0.0, %v474
    %476 = vdwg.mxu0
    %v477 = vmul.f32 %v475, 0.25
    %v478 = vsel %vm297, %v477, -inf
    %479 = vmax.xlane.f32.xlu0 %v478
    %v480 = vpop.xlane.xlu0 %479
    %v481 = vsub.f32 %v477, %v480
    %v482 = vmul.f32 %v481, 1.442695
    %v483 = vpow.pop %v482
    %v484 = vsel %vm297, %v483, 0.0
    %485 = vadd.xlane.f32.xlu0 %v484
    %v486 = vpop.xlane.xlu0 %485
    %v487 = vrcp.pop %v486
    %v488 = vmul.f32 %v483, %v487
    %489 = vrot.lane.b32.xlu0 %v258, 96
    %v490 = vpop.permute.xlu0 %489
    %v492 = vsel %vm309, %v488, 0
    %v494 = vsel %vm159, %v490, 0
    %496 = vmatpush.msra.mxu0 0.0
    %497 = vmatpush.msra.mxu0 0.0
    %498 = vmatpush.msra.mxu0 0.0
    %499 = vmatpush.msra.mxu0 0.0
    %500 = vmatpush.msra.mxu0 0.0
    %501 = vmatpush.msra.mxu0 0.0
    %502 = vmatpush.msra.mxu0 0.0
    %503 = vmatpush.msra.mxu0 0.0
    %504 = vmatpush.msra.mxu0 0.0
    %505 = vmatpush.msra.mxu0 0.0
    %506 = vmatpush.msra.mxu0 0.0
    %507 = vmatpush.msra.mxu0 0.0
    %508 = vmatpush.msra.mxu0 0.0
    %509 = vmatpush.msra.mxu0 0.0
    %510 = vmatpush.msra.mxu0 0.0
    %511 = vmatpush.msra.mxu0 %v494
    %512 = vmatmul.f32.gmra.mxu0 %v492
    %v513 = vpop.f32.mrf.mxu0
    %v514 = vadd.f32 0.0, %v513
    %515 = vdwg.mxu0
    %v517 = vsel %vm271, %v514, 0
    %519 = vmatpush.msra.mxu0 0.0
    %520 = vmatpush.msra.mxu0 0.0
    %521 = vmatpush.msra.mxu0 0.0
    %522 = vmatpush.msra.mxu0 0.0
    %523 = vmatpush.msra.mxu0 0.0
    %524 = vmatpush.msra.mxu0 0.0
    %525 = vmatpush.msra.mxu0 0.0
    %526 = vmatpush.msra.mxu0 0.0
    %527 = vmatpush.msra.mxu0 0.0
    %528 = vmatpush.msra.mxu0 0.0
    %529 = vmatpush.msra.mxu0 0.0
    %530 = vmatpush.msra.mxu0 0.0
    %531 = vmatpush.msra.mxu0 0.0
    %532 = vmatpush.msra.mxu0 0.0
    %533 = vmatpush.msra.mxu0 %v265
    %534 = vmatpush.msra.mxu0 %v264
    %535 = vmatmul.f32.gmra.mxu0 %v517
    %v536 = vpop.f32.mrf.mxu0
    %v537 = vadd.f32 0.0, %v536
    %538 = vdwg.mxu0
    %v539 = vadd.f32 %v447, %v537
    %540 = vrot.lane.b32.xlu0 %v238, 80
    %v541 = vpop.permute.xlu0 %540
    %542 = vrot.lane.b32.xlu0 %v238, 16
    %v543 = vpop.permute.xlu0 %542
    %v544 = vsel %vm271, %v541, 0
    %v546 = vsel %vm271, %v543, 0
    %548 = vmatpush.xpose.msra.mxu0 0.0
    %549 = vmatpush.xpose.msra.mxu0 0.0
    %550 = vmatpush.xpose.msra.mxu0 0.0
    %551 = vmatpush.xpose.msra.mxu0 0.0
    %552 = vmatpush.xpose.msra.mxu0 0.0
    %553 = vmatpush.xpose.msra.mxu0 0.0
    %554 = vmatpush.xpose.msra.mxu0 0.0
    %555 = vmatpush.xpose.msra.mxu0 0.0
    %556 = vmatpush.xpose.msra.mxu0 0.0
    %557 = vmatpush.xpose.msra.mxu0 0.0
    %558 = vmatpush.xpose.msra.mxu0 0.0
    %559 = vmatpush.xpose.msra.mxu0 0.0
    %560 = vmatpush.xpose.msra.mxu0 0.0
    %561 = vmatpush.xpose.msra.mxu0 0.0
    %562 = vmatpush.xpose.msra.mxu0 0.0
    %563 = vmatpush.xpose.msra.mxu0 %v546
    %564 = vmatmul.f32.gmra.mxu0 %v544
    %v565 = vpop.f32.mrf.mxu0
    %v566 = vadd.f32 0.0, %v565
    %567 = vdwg.mxu0
    %v568 = vmul.f32 %v566, 0.25
    %v569 = vsel %vm297, %v568, -inf
    %570 = vmax.xlane.f32.xlu0 %v569
    %v571 = vpop.xlane.xlu0 %570
    %v572 = vsub.f32 %v568, %v571
    %v573 = vmul.f32 %v572, 1.442695
    %v574 = vpow.pop %v573
    %v575 = vsel %vm297, %v574, 0.0
    %576 = vadd.xlane.f32.xlu0 %v575
    %v577 = vpop.xlane.xlu0 %576
    %v578 = vrcp.pop %v577
    %v579 = vmul.f32 %v574, %v578
    %580 = vrot.lane.b32.xlu0 %v258, 80
    %v581 = vpop.permute.xlu0 %580
    %v583 = vsel %vm309, %v579, 0
    %v585 = vsel %vm159, %v581, 0
    %587 = vmatpush.msra.mxu0 0.0
    %588 = vmatpush.msra.mxu0 0.0
    %589 = vmatpush.msra.mxu0 0.0
    %590 = vmatpush.msra.mxu0 0.0
    %591 = vmatpush.msra.mxu0 0.0
    %592 = vmatpush.msra.mxu0 0.0
    %593 = vmatpush.msra.mxu0 0.0
    %594 = vmatpush.msra.mxu0 0.0
    %595 = vmatpush.msra.mxu0 0.0
    %596 = vmatpush.msra.mxu0 0.0
    %597 = vmatpush.msra.mxu0 0.0
    %598 = vmatpush.msra.mxu0 0.0
    %599 = vmatpush.msra.mxu0 0.0
    %600 = vmatpush.msra.mxu0 0.0
    %601 = vmatpush.msra.mxu0 0.0
    %602 = vmatpush.msra.mxu0 %v585
    %603 = vmatmul.f32.gmra.mxu0 %v583
    %v604 = vpop.f32.mrf.mxu0
    %v605 = vadd.f32 0.0, %v604
    %606 = vdwg.mxu0
    %v608 = vsel %vm271, %v605, 0
    %610 = vmatpush.msra.mxu0 0.0
    %611 = vmatpush.msra.mxu0 0.0
    %612 = vmatpush.msra.mxu0 0.0
    %613 = vmatpush.msra.mxu0 0.0
    %614 = vmatpush.msra.mxu0 0.0
    %615 = vmatpush.msra.mxu0 0.0
    %616 = vmatpush.msra.mxu0 0.0
    %617 = vmatpush.msra.mxu0 0.0
    %618 = vmatpush.msra.mxu0 0.0
    %619 = vmatpush.msra.mxu0 0.0
    %620 = vmatpush.msra.mxu0 0.0
    %621 = vmatpush.msra.mxu0 0.0
    %622 = vmatpush.msra.mxu0 0.0
    %623 = vmatpush.msra.mxu0 0.0
    %624 = vmatpush.msra.mxu0 %v267
    %625 = vmatpush.msra.mxu0 %v266
    %626 = vmatmul.f32.gmra.mxu0 %v608
    %v627 = vpop.f32.mrf.mxu0
    %v628 = vadd.f32 0.0, %v627
    %629 = vdwg.mxu0
    %v630 = vadd.f32 %v539, %v628
    %v631 = vadd.f32 %v152, %v630
    %v632 = vld [vmem:[%s10] sm:$0x1]
    %v634 = vperm.slane %v632, 0
    %v636 = vadd.f32 %v631, %v634
    %v637 = vld [vmem:[%s11] sm:$0x1f]
    %v638 = vld [vmem:[%s12] sm:$0x1f]
    %v639 = vsel %vm155, %v636, 0.0
    %640 = vadd.xlane.f32.xlu0 %v639
    %v641 = vpop.xlane.xlu0 %640
    %v642 = vsel %vm159, %v641, 0.0
    %v643 = vrot.slane %v642, 4
    %v644 = vadd.f32 %v642, %v643
    %v645 = vrot.slane %v644, 2
    %v646 = vadd.f32 %v644, %v645
    %v647 = vrot.slane %v646, 1
    %v648 = vadd.f32 %v646, %v647
    %v649 = vmul.f32 %v648, 0.003125
    %v650 = vsub.f32 %v636, %v649
    %v651 = vmul.f32 %v650, %v650
    %v652 = vsel %vm155, %v651, 0.0
    %653 = vadd.xlane.f32.xlu0 %v652
    %v654 = vpop.xlane.xlu0 %653
    %v655 = vsel %vm159, %v654, 0.0
    %v656 = vrot.slane %v655, 4
    %v657 = vadd.f32 %v655, %v656
    %v658 = vrot.slane %v657, 2
    %v659 = vadd.f32 %v657, %v658
    %v660 = vrot.slane %v659, 1
    %v661 = vadd.f32 %v659, %v660
    %v662 = vmul.f32 %v661, 0.003125
    %v663 = vadd.f32 %v662, 1e-05
    %v664 = vrsqrt.pop %v663
    %v665 = vmul.f32 %v664, %v663
    %v666 = vmul.f32 %v665, %v664
    %v667 = vmul.f32 0.5, %v666
    %v668 = vsub.f32 1.5, %v667
    %v669 = vmul.f32 %v664, %v668
    %vm670 = vweird.f32 %v663
    %vm671 = vweird.f32 %v664
    %vm672 = vmor %vm670, %vm671
    %v673 = vsel %vm672, %v664, %v669
    %v674 = vmul.f32 %v650, %v673
    %v675 = vmul.f32 %v674, %v637
    %v676 = vadd.f32 %v675, %v638
    %v677 = vld [vmem:[%s13] sm:$0xff]
    %v678 = vld [vmem:[%s13 + $0x8] sm:$0xff]
    %v679 = vld [vmem:[%s13 + $0x10] sm:$0xff]
    %v680 = vld [vmem:[%s13 + $0x18] sm:$0xff]
    %v681 = vld [vmem:[%s13 + $0x20] sm:$0xff]
    %v682 = vld [vmem:[%s13 + $0x28] sm:$0xff]
    %v683 = vld [vmem:[%s13 + $0x30] sm:$0xff]
    %v684 = vld [vmem:[%s13 + $0x38] sm:$0xff]
    %v685 = vld [vmem:[%s14] sm:$0x1]
    %v687 = vperm.slane %v685, 0
    %v690 = vsel %vm99, %v676, 0
    %692 = vmatpush.msra.mxu0 0.0
    %693 = vmatpush.msra.mxu0 0.0
    %694 = vmatpush.msra.mxu0 0.0
    %695 = vmatpush.msra.mxu0 0.0
    %696 = vmatpush.msra.mxu0 0.0
    %697 = vmatpush.msra.mxu0 0.0
    %698 = vmatpush.msra.mxu0 0.0
    %699 = vmatpush.msra.mxu0 0.0
    %700 = vmatpush.msra.mxu0 %v684
    %701 = vmatpush.msra.mxu0 %v683
    %702 = vmatpush.msra.mxu0 %v682
    %703 = vmatpush.msra.mxu0 %v681
    %704 = vmatpush.msra.mxu0 %v680
    %705 = vmatpush.msra.mxu0 %v679
    %706 = vmatpush.msra.mxu0 %v678
    %707 = vmatpush.msra.mxu0 %v677
    %708 = vmatmul.f32.gmra.mxu0 %v690
    %v709 = vpop.f32.mrf.mxu0
    %v710 = vadd.f32 %v687, %v709
    %711 = vdwg.mxu0
    %v712 = vmul.f32 %v710, 0.5
    %v713 = vmul.f32 %v710, 0.70710677
    %vm714 = vcmp.lt.f32.partialorder %v713, 0.0
    %v715 = vsel %vm714, -1.0, 1.0
    %v716 = vand.u32 2147483647, %v713
    %v717 = vmul.f32 %v716, 0.3275911
    %v718 = vadd.f32 %v717, 1.0
    %v719 = vrcp.pop %v718
    %v720 = vmul.f32 %v718, %v719
    %v721 = vsub.f32 1.0, %v720
    %v722 = vmul.f32 %v719, %v721
    %v723 = vadd.f32 %v719, %v722
    %vm724 = vweird.f32 %v718
    %vm725 = vweird.f32 %v719
    %vm726 = vmor %vm724, %vm725
    %v727 = vsel %vm726, %v719, %v723
    %v728 = vand.u32 2147483647, %v718
    %vm729 = vcmp.eq.f32.partialorder %v728, 8.507059e+37
    %v730 = vand.u32 %v718, 2147483648
    %v731 = vor.u32 1.1754944e-38, %v730
    %v732 = vsel %vm729, %v731, %v727
    %v733 = vmul.f32 1.0, %v732
    %v734 = vmul.f32 %v733, 1.0614054
    %v735 = vadd.f32 %v734, -1.4531521
    %v736 = vmul.f32 %v735, %v733
    %v737 = vadd.f32 %v736, 1.4214138
    %v738 = vmul.f32 %v737, %v733
    %v739 = vadd.f32 %v738, -0.28449672
    %v740 = vmul.f32 %v739, %v733
    %v741 = vadd.f32 %v740, 0.2548296
    %v742 = vmul.f32 %v741, %v733
    %v743 = vsub.f32 0.0, %v716
    %v744 = vmul.f32 %v743, %v716
    %v745 = vmul.f32 %v744, 1.442695
    %v746 = vpow.pop %v745
    %v747 = vmul.f32 %v742, %v746
    %v748 = vsub.f32 1.0, %v747
    %v749 = vmul.f32 %v715, %v748
    %v750 = vadd.f32 %v749, 1.0
    %v751 = vmul.f32 %v712, %v750
    %v752 = vld [vmem:[%s15] sm:$0xff]
    %v753 = vld [vmem:[%s15 + $0x8] sm:$0xff]
    %v754 = vld [vmem:[%s15 + $0x10] sm:$0xff]
    %v755 = vld [vmem:[%s15 + $0x18] sm:$0xff]
    %v756 = vld [vmem:[%s15 + $0x20] sm:$0xff]
    %v757 = vld [vmem:[%s15 + $0x28] sm:$0xff]
    %v758 = vld [vmem:[%s15 + $0x30] sm:$0xff]
    %v759 = vld [vmem:[%s15 + $0x38] sm:$0xff]
    %v760 = vld [vmem:[%s16] sm:$0x1]
    %v762 = vperm.slane %v760, 0
    %v765 = vsel %vm99, %v751, 0
    %767 = vmatpush.msra.mxu0 0.0
    %768 = vmatpush.msra.mxu0 0.0
    %769 = vmatpush.msra.mxu0 0.0
    %770 = vmatpush.msra.mxu0 0.0
    %771 = vmatpush.msra.mxu0 0.0
    %772 = vmatpush.msra.mxu0 0.0
    %773 = vmatpush.msra.mxu0 0.0
    %774 = vmatpush.msra.mxu0 0.0
    %775 = vmatpush.msra.mxu0 %v759
    %776 = vmatpush.msra.mxu0 %v758
    %777 = vmatpush.msra.mxu0 %v757
    %778 = vmatpush.msra.mxu0 %v756
    %779 = vmatpush.msra.mxu0 %v755
    %780 = vmatpush.msra.mxu0 %v754
    %781 = vmatpush.msra.mxu0 %v753
    %782 = vmatpush.msra.mxu0 %v752
    %783 = vmatmul.f32.gmra.mxu0 %v765
    %v784 = vpop.f32.mrf.mxu0
    %v785 = vadd.f32 %v762, %v784
    %786 = vdwg.mxu0
    %v787 = vmul.f32 %v785, 0.5
    %v788 = vmul.f32 %v785, 0.70710677
    %vm789 = vcmp.lt.f32.partialorder %v788, 0.0
    %v790 = vsel %vm789, -1.0, 1.0
    %v791 = vand.u32 2147483647, %v788
    %v792 = vmul.f32 %v791, 0.3275911
    %v793 = vadd.f32 %v792, 1.0
    %v794 = vrcp.pop %v793
    %v795 = vmul.f32 %v793, %v794
    %v796 = vsub.f32 1.0, %v795
    %v797 = vmul.f32 %v794, %v796
    %v798 = vadd.f32 %v794, %v797
    %vm799 = vweird.f32 %v793
    %vm800 = vweird.f32 %v794
    %vm801 = vmor %vm799, %vm800
    %v802 = vsel %vm801, %v794, %v798
    %v803 = vand.u32 2147483647, %v793
    %vm804 = vcmp.eq.f32.partialorder %v803, 8.507059e+37
    %v805 = vand.u32 %v793, 2147483648
    %v806 = vor.u32 1.1754944e-38, %v805
    %v807 = vsel %vm804, %v806, %v802
    %v808 = vmul.f32 1.0, %v807
    %v809 = vmul.f32 %v808, 1.0614054
    %v810 = vadd.f32 %v809, -1.4531521
    %v811 = vmul.f32 %v810, %v808
    %v812 = vadd.f32 %v811, 1.4214138
    %v813 = vmul.f32 %v812, %v808
    %v814 = vadd.f32 %v813, -0.28449672
    %v815 = vmul.f32 %v814, %v808
    %v816 = vadd.f32 %v815, 0.2548296
    %v817 = vmul.f32 %v816, %v808
    %v818 = vsub.f32 0.0, %v791
    %v819 = vmul.f32 %v818, %v791
    %v820 = vmul.f32 %v819, 1.442695
    %v821 = vpow.pop %v820
    %v822 = vmul.f32 %v817, %v821
    %v823 = vsub.f32 1.0, %v822
    %v824 = vmul.f32 %v790, %v823
    %v825 = vadd.f32 %v824, 1.0
    %v826 = vmul.f32 %v787, %v825
    %v827 = vadd.f32 %v636, %v826
    %s828 = scalar_lea.vmem %s5, 8
    %v829 = vld [vmem:[%s828] sm:$0x1f]
    %s830 = scalar_lea.vmem %s6, 8
    %v831 = vld [vmem:[%s830] sm:$0x1f]
    %v832 = vsel %vm155, %v827, 0.0
    %833 = vadd.xlane.f32.xlu0 %v832
    %v834 = vpop.xlane.xlu0 %833
    %v835 = vsel %vm159, %v834, 0.0
    %v836 = vrot.slane %v835, 4
    %v837 = vadd.f32 %v835, %v836
    %v838 = vrot.slane %v837, 2
    %v839 = vadd.f32 %v837, %v838
    %v840 = vrot.slane %v839, 1
    %v841 = vadd.f32 %v839, %v840
    %v842 = vmul.f32 %v841, 0.003125
    %v843 = vsub.f32 %v827, %v842
    %v844 = vmul.f32 %v843, %v843
    %v845 = vsel %vm155, %v844, 0.0
    %846 = vadd.xlane.f32.xlu0 %v845
    %v847 = vpop.xlane.xlu0 %846
    %v848 = vsel %vm159, %v847, 0.0
    %v849 = vrot.slane %v848, 4
    %v850 = vadd.f32 %v848, %v849
    %v851 = vrot.slane %v850, 2
    %v852 = vadd.f32 %v850, %v851
    %v853 = vrot.slane %v852, 1
    %v854 = vadd.f32 %v852, %v853
    %v855 = vmul.f32 %v854, 0.003125
    %v856 = vadd.f32 %v855, 1e-05
    %v857 = vrsqrt.pop %v856
    %v858 = vmul.f32 %v857, %v856
    %v859 = vmul.f32 %v858, %v857
    %v860 = vmul.f32 0.5, %v859
    %v861 = vsub.f32 1.5, %v860
    %v862 = vmul.f32 %v857, %v861
    %vm863 = vweird.f32 %v856
    %vm864 = vweird.f32 %v857
    %vm865 = vmor %vm863, %vm864
    %v866 = vsel %vm865, %v857, %v862
    %v867 = vmul.f32 %v843, %v866
    %v868 = vmul.f32 %v867, %v829
    %v869 = vadd.f32 %v868, %v831
    %s870 = scalar_lea.vmem %s7, 128
    %v871 = vld [vmem:[%s870] sm:$0xff]
    %v872 = vld [vmem:[%s870 + $0x8] sm:$0xff]
    %v873 = vld [vmem:[%s870 + $0x10] sm:$0xff]
    %v874 = vld [vmem:[%s870 + $0x18] sm:$0xff]
    %v875 = vld [vmem:[%s870 + $0x20] sm:$0xff]
    %v876 = vld [vmem:[%s870 + $0x28] sm:$0xff]
    %v877 = vld [vmem:[%s870 + $0x30] sm:$0xff]
    %v878 = vld [vmem:[%s870 + $0x38] sm:$0xff]
    %v879 = vld [vmem:[%s870 + $0x40] sm:$0xff]
    %v880 = vld [vmem:[%s870 + $0x48] sm:$0xff]
    %v881 = vld [vmem:[%s870 + $0x50] sm:$0xff]
    %v882 = vld [vmem:[%s870 + $0x58] sm:$0xff]
    %v883 = vld [vmem:[%s870 + $0x60] sm:$0xff]
    %v884 = vld [vmem:[%s870 + $0x68] sm:$0xff]
    %v885 = vld [vmem:[%s870 + $0x70] sm:$0xff]
    %v886 = vld [vmem:[%s870 + $0x78] sm:$0xff]
    %s887 = scalar_lea.vmem %s8, 2
    %v888 = vld [vmem:[%s887] sm:$0x3]
    %v890 = vperm.slane %v888, 0
    %v891 = vperm.slane %v888, 1
    %v895 = vsel %vm99, %v869, 0
    %897 = vmatpush.msra.mxu0 0.0
    %898 = vmatpush.msra.mxu0 0.0
    %899 = vmatpush.msra.mxu0 0.0
    %900 = vmatpush.msra.mxu0 0.0
    %901 = vmatpush.msra.mxu0 0.0
    %902 = vmatpush.msra.mxu0 0.0
    %903 = vmatpush.msra.mxu0 0.0
    %904 = vmatpush.msra.mxu0 0.0
    %905 = vmatpush.msra.mxu0 %v885
    %906 = vmatpush.msra.mxu0 %v883
    %907 = vmatpush.msra.mxu0 %v881
    %908 = vmatpush.msra.mxu0 %v879
    %909 = vmatpush.msra.mxu0 %v877
    %910 = vmatpush.msra.mxu0 %v875
    %911 = vmatpush.msra.mxu0 %v873
    %912 = vmatpush.msra.mxu0 %v871
    %913 = vmatmul.f32.gmra.mxu0 %v895
    %v914 = vpop.f32.mrf.mxu0
    %v915 = vadd.f32 %v890, %v914
    %916 = vdwg.mxu0
    %917 = vmatpush.msra.mxu0 0.0
    %918 = vmatpush.msra.mxu0 0.0
    %919 = vmatpush.msra.mxu0 0.0
    %920 = vmatpush.msra.mxu0 0.0
    %921 = vmatpush.msra.mxu0 0.0
    %922 = vmatpush.msra.mxu0 0.0
    %923 = vmatpush.msra.mxu0 0.0
    %924 = vmatpush.msra.mxu0 0.0
    %925 = vmatpush.msra.mxu0 %v886
    %926 = vmatpush.msra.mxu0 %v884
    %927 = vmatpush.msra.mxu0 %v882
    %928 = vmatpush.msra.mxu0 %v880
    %929 = vmatpush.msra.mxu0 %v878
    %930 = vmatpush.msra.mxu0 %v876
    %931 = vmatpush.msra.mxu0 %v874
    %932 = vmatpush.msra.mxu0 %v872
    %933 = vmatmul.f32.gmra.mxu0 %v895
    %v934 = vpop.f32.mrf.mxu0
    %v935 = vadd.f32 %v891, %v934
    %936 = vdwg.mxu0
    %s937 = scalar_lea.vmem %s9, 64
    %v938 = vld [vmem:[%s937] sm:$0xff]
    %v939 = vld [vmem:[%s937 + $0x8] sm:$0xff]
    %v940 = vld [vmem:[%s937 + $0x10] sm:$0xff]
    %v941 = vld [vmem:[%s937 + $0x18] sm:$0xff]
    %v942 = vld [vmem:[%s937 + $0x20] sm:$0xff]
    %v943 = vld [vmem:[%s937 + $0x28] sm:$0xff]
    %v944 = vld [vmem:[%s937 + $0x30] sm:$0xff]
    %v945 = vld [vmem:[%s937 + $0x38] sm:$0xff]
    %947 = vrot.lane.b32.xlu0 %v915, 64
    %v948 = vpop.permute.xlu0 %947
    %v949 = vsel %vm271, %v915, 0
    %v951 = vsel %vm271, %v948, 0
    %953 = vmatpush.xpose.msra.mxu0 0.0
    %954 = vmatpush.xpose.msra.mxu0 0.0
    %955 = vmatpush.xpose.msra.mxu0 0.0
    %956 = vmatpush.xpose.msra.mxu0 0.0
    %957 = vmatpush.xpose.msra.mxu0 0.0
    %958 = vmatpush.xpose.msra.mxu0 0.0
    %959 = vmatpush.xpose.msra.mxu0 0.0
    %960 = vmatpush.xpose.msra.mxu0 0.0
    %961 = vmatpush.xpose.msra.mxu0 0.0
    %962 = vmatpush.xpose.msra.mxu0 0.0
    %963 = vmatpush.xpose.msra.mxu0 0.0
    %964 = vmatpush.xpose.msra.mxu0 0.0
    %965 = vmatpush.xpose.msra.mxu0 0.0
    %966 = vmatpush.xpose.msra.mxu0 0.0
    %967 = vmatpush.xpose.msra.mxu0 0.0
    %968 = vmatpush.xpose.msra.mxu0 %v951
    %969 = vmatmul.f32.gmra.mxu0 %v949
    %v970 = vpop.f32.mrf.mxu0
    %v971 = vadd.f32 0.0, %v970
    %972 = vdwg.mxu0
    %v973 = vmul.f32 %v971, 0.25
    %v974 = vsel %vm297, %v973, -inf
    %975 = vmax.xlane.f32.xlu0 %v974
    %v976 = vpop.xlane.xlu0 %975
    %v977 = vsub.f32 %v973, %v976
    %v978 = vmul.f32 %v977, 1.442695
    %v979 = vpow.pop %v978
    %v980 = vsel %vm297, %v979, 0.0
    %981 = vadd.xlane.f32.xlu0 %v980
    %v982 = vpop.xlane.xlu0 %981
    %v983 = vrcp.pop %v982
    %v984 = vmul.f32 %v979, %v983
    %v986 = vsel %vm309, %v984, 0
    %v989 = vsel %vm159, %v935, 0
    %991 = vmatpush.msra.mxu0 0.0
    %992 = vmatpush.msra.mxu0 0.0
    %993 = vmatpush.msra.mxu0 0.0
    %994 = vmatpush.msra.mxu0 0.0
    %995 = vmatpush.msra.mxu0 0.0
    %996 = vmatpush.msra.mxu0 0.0
    %997 = vmatpush.msra.mxu0 0.0
    %998 = vmatpush.msra.mxu0 0.0
    %999 = vmatpush.msra.mxu0 0.0
    %1000 = vmatpush.msra.mxu0 0.0
    %1001 = vmatpush.msra.mxu0 0.0
    %1002 = vmatpush.msra.mxu0 0.0
    %1003 = vmatpush.msra.mxu0 0.0
    %1004 = vmatpush.msra.mxu0 0.0
    %1005 = vmatpush.msra.mxu0 0.0
    %1006 = vmatpush.msra.mxu0 %v989
    %1007 = vmatmul.f32.gmra.mxu0 %v986
    %v1008 = vpop.f32.mrf.mxu0
    %v1009 = vadd.f32 0.0, %v1008
    %1010 = vdwg.mxu0
    %1011 = vrot.lane.b32.xlu0 %v915, 112
    %v1012 = vpop.permute.xlu0 %1011
    %1013 = vrot.lane.b32.xlu0 %v915, 48
    %v1014 = vpop.permute.xlu0 %1013
    %v1015 = vsel %vm271, %v1012, 0
    %v1017 = vsel %vm271, %v1014, 0
    %1019 = vmatpush.xpose.msra.mxu0 0.0
    %1020 = vmatpush.xpose.msra.mxu0 0.0
    %1021 = vmatpush.xpose.msra.mxu0 0.0
    %1022 = vmatpush.xpose.msra.mxu0 0.0
    %1023 = vmatpush.xpose.msra.mxu0 0.0
    %1024 = vmatpush.xpose.msra.mxu0 0.0
    %1025 = vmatpush.xpose.msra.mxu0 0.0
    %1026 = vmatpush.xpose.msra.mxu0 0.0
    %1027 = vmatpush.xpose.msra.mxu0 0.0
    %1028 = vmatpush.xpose.msra.mxu0 0.0
    %1029 = vmatpush.xpose.msra.mxu0 0.0
    %1030 = vmatpush.xpose.msra.mxu0 0.0
    %1031 = vmatpush.xpose.msra.mxu0 0.0
    %1032 = vmatpush.xpose.msra.mxu0 0.0
    %1033 = vmatpush.xpose.msra.mxu0 0.0
    %1034 = vmatpush.xpose.msra.mxu0 %v1017
    %1035 = vmatmul.f32.gmra.mxu0 %v1015
    %v1036 = vpop.f32.mrf.mxu0
    %v1037 = vadd.f32 0.0, %v1036
    %1038 = vdwg.mxu0
    %v1039 = vmul.f32 %v1037, 0.25
    %v1040 = vsel %vm297, %v1039, -inf
    %1041 = vmax.xlane.f32.xlu0 %v1040
    %v1042 = vpop.xlane.xlu0 %1041
    %v1043 = vsub.f32 %v1039, %v1042
    %v1044 = vmul.f32 %v1043, 1.442695
    %v1045 = vpow.pop %v1044
    %v1046 = vsel %vm297, %v1045, 0.0
    %1047 = vadd.xlane.f32.xlu0 %v1046
    %v1048 = vpop.xlane.xlu0 %1047
    %v1049 = vrcp.pop %v1048
    %v1050 = vmul.f32 %v1045, %v1049
    %1051 = vrot.lane.b32.xlu0 %v935, 112
    %v1052 = vpop.permute.xlu0 %1051
    %v1054 = vsel %vm309, %v1050, 0
    %v1056 = vsel %vm159, %v1052, 0
    %1058 = vmatpush.msra.mxu0 0.0
    %1059 = vmatpush.msra.mxu0 0.0
    %1060 = vmatpush.msra.mxu0 0.0
    %1061 = vmatpush.msra.mxu0 0.0
    %1062 = vmatpush.msra.mxu0 0.0
    %1063 = vmatpush.msra.mxu0 0.0
    %1064 = vmatpush.msra.mxu0 0.0
    %1065 = vmatpush.msra.mxu0 0.0
    %1066 = vmatpush.msra.mxu0 0.0
    %1067 = vmatpush.msra.mxu0 0.0
    %1068 = vmatpush.msra.mxu0 0.0
    %1069 = vmatpush.msra.mxu0 0.0
    %1070 = vmatpush.msra.mxu0 0.0
    %1071 = vmatpush.msra.mxu0 0.0
    %1072 = vmatpush.msra.mxu0 0.0
    %1073 = vmatpush.msra.mxu0 %v1056
    %1074 = vmatmul.f32.gmra.mxu0 %v1054
    %v1075 = vpop.f32.mrf.mxu0
    %v1076 = vadd.f32 0.0, %v1075
    %1077 = vdwg.mxu0
    %v1079 = vsel %vm271, %v1076, 0
    %1081 = vmatpush.msra.mxu0 0.0
    %1082 = vmatpush.msra.mxu0 0.0
    %1083 = vmatpush.msra.mxu0 0.0
    %1084 = vmatpush.msra.mxu0 0.0
    %1085 = vmatpush.msra.mxu0 0.0
    %1086 = vmatpush.msra.mxu0 0.0
    %1087 = vmatpush.msra.mxu0 0.0
    %1088 = vmatpush.msra.mxu0 0.0
    %1089 = vmatpush.msra.mxu0 0.0
    %1090 = vmatpush.msra.mxu0 0.0
    %1091 = vmatpush.msra.mxu0 0.0
    %1092 = vmatpush.msra.mxu0 0.0
    %1093 = vmatpush.msra.mxu0 0.0
    %1094 = vmatpush.msra.mxu0 0.0
    %1095 = vmatpush.msra.mxu0 %v941
    %1096 = vmatpush.msra.mxu0 %v940
    %1097 = vmatmul.f32.gmra.mxu0 %v1079
    %v1098 = vpop.f32.mrf.mxu0
    %v1099 = vadd.f32 0.0, %v1098
    %1100 = vdwg.mxu0
    %v1102 = vsel %vm271, %v1009, 0
    %1104 = vmatpush.msra.mxu0 0.0
    %1105 = vmatpush.msra.mxu0 0.0
    %1106 = vmatpush.msra.mxu0 0.0
    %1107 = vmatpush.msra.mxu0 0.0
    %1108 = vmatpush.msra.mxu0 0.0
    %1109 = vmatpush.msra.mxu0 0.0
    %1110 = vmatpush.msra.mxu0 0.0
    %1111 = vmatpush.msra.mxu0 0.0
    %1112 = vmatpush.msra.mxu0 0.0
    %1113 = vmatpush.msra.mxu0 0.0
    %1114 = vmatpush.msra.mxu0 0.0
    %1115 = vmatpush.msra.mxu0 0.0
    %1116 = vmatpush.msra.mxu0 0.0
    %1117 = vmatpush.msra.mxu0 0.0
    %1118 = vmatpush.msra.mxu0 %v939
    %1119 = vmatpush.msra.mxu0 %v938
    %1120 = vmatmul.f32.gmra.mxu0 %v1102
    %v1121 = vpop.f32.mrf.mxu0
    %v1122 = vadd.f32 %v1099, %v1121
    %1123 = vdwg.mxu0
    %1124 = vrot.lane.b32.xlu0 %v915, 96
    %v1125 = vpop.permute.xlu0 %1124
    %1126 = vrot.lane.b32.xlu0 %v915, 32
    %v1127 = vpop.permute.xlu0 %1126
    %v1128 = vsel %vm271, %v1125, 0
    %v1130 = vsel %vm271, %v1127, 0
    %1132 = vmatpush.xpose.msra.mxu0 0.0
    %1133 = vmatpush.xpose.msra.mxu0 0.0
    %1134 = vmatpush.xpose.msra.mxu0 0.0
    %1135 = vmatpush.xpose.msra.mxu0 0.0
    %1136 = vmatpush.xpose.msra.mxu0 0.0
    %1137 = vmatpush.xpose.msra.mxu0 0.0
    %1138 = vmatpush.xpose.msra.mxu0 0.0
    %1139 = vmatpush.xpose.msra.mxu0 0.0
    %1140 = vmatpush.xpose.msra.mxu0 0.0
    %1141 = vmatpush.xpose.msra.mxu0 0.0
    %1142 = vmatpush.xpose.msra.mxu0 0.0
    %1143 = vmatpush.xpose.msra.mxu0 0.0
    %1144 = vmatpush.xpose.msra.mxu0 0.0
    %1145 = vmatpush.xpose.msra.mxu0 0.0
    %1146 = vmatpush.xpose.msra.mxu0 0.0
    %1147 = vmatpush.xpose.msra.mxu0 %v1130
    %1148 = vmatmul.f32.gmra.mxu0 %v1128
    %v1149 = vpop.f32.mrf.mxu0
    %v1150 = vadd.f32 0.0, %v1149
    %1151 = vdwg.mxu0
    %v1152 = vmul.f32 %v1150, 0.25
    %v1153 = vsel %vm297, %v1152, -inf
    %1154 = vmax.xlane.f32.xlu0 %v1153
    %v1155 = vpop.xlane.xlu0 %1154
    %v1156 = vsub.f32 %v1152, %v1155
    %v1157 = vmul.f32 %v1156, 1.442695
    %v1158 = vpow.pop %v1157
    %v1159 = vsel %vm297, %v1158, 0.0
    %1160 = vadd.xlane.f32.xlu0 %v1159
    %v1161 = vpop.xlane.xlu0 %1160
    %v1162 = vrcp.pop %v1161
    %v1163 = vmul.f32 %v1158, %v1162
    %1164 = vrot.lane.b32.xlu0 %v935, 96
    %v1165 = vpop.permute.xlu0 %1164
    %v1167 = vsel %vm309, %v1163, 0
    %v1169 = vsel %vm159, %v1165, 0
    %1171 = vmatpush.msra.mxu0 0.0
    %1172 = vmatpush.msra.mxu0 0.0
    %1173 = vmatpush.msra.mxu0 0.0
    %1174 = vmatpush.msra.mxu0 0.0
    %1175 = vmatpush.msra.mxu0 0.0
    %1176 = vmatpush.msra.mxu0 0.0
    %1177 = vmatpush.msra.mxu0 0.0
    %1178 = vmatpush.msra.mxu0 0.0
    %1179 = vmatpush.msra.mxu0 0.0
    %1180 = vmatpush.msra.mxu0 0.0
    %1181 = vmatpush.msra.mxu0 0.0
    %1182 = vmatpush.msra.mxu0 0.0
    %1183 = vmatpush.msra.mxu0 0.0
    %1184 = vmatpush.msra.mxu0 0.0
    %1185 = vmatpush.msra.mxu0 0.0
    %1186 = vmatpush.msra.mxu0 %v1169
    %1187 = vmatmul.f32.gmra.mxu0 %v1167
    %v1188 = vpop.f32.mrf.mxu0
    %v1189 = vadd.f32 0.0, %v1188
    %1190 = vdwg.mxu0
    %v1192 = vsel %vm271, %v1189, 0
    %1194 = vmatpush.msra.mxu0 0.0
    %1195 = vmatpush.msra.mxu0 0.0
    %1196 = vmatpush.msra.mxu0 0.0
    %1197 = vmatpush.msra.mxu0 0.0
    %1198 = vmatpush.msra.mxu0 0.0
    %1199 = vmatpush.msra.mxu0 0.0
    %1200 = vmatpush.msra.mxu0 0.0
    %1201 = vmatpush.msra.mxu0 0.0
    %1202 = vmatpush.msra.mxu0 0.0
    %1203 = vmatpush.msra.mxu0 0.0
    %1204 = vmatpush.msra.mxu0 0.0
    %1205 = vmatpush.msra.mxu0 0.0
    %1206 = vmatpush.msra.mxu0 0.0
    %1207 = vmatpush.msra.mxu0 0.0
    %1208 = vmatpush.msra.mxu0 %v943
    %1209 = vmatpush.msra.mxu0 %v942
    %1210 = vmatmul.f32.gmra.mxu0 %v1192
    %v1211 = vpop.f32.mrf.mxu0
    %v1212 = vadd.f32 0.0, %v1211
    %1213 = vdwg.mxu0
    %v1214 = vadd.f32 %v1122, %v1212
    %1215 = vrot.lane.b32.xlu0 %v915, 80
    %v1216 = vpop.permute.xlu0 %1215
    %1217 = vrot.lane.b32.xlu0 %v915, 16
    %v1218 = vpop.permute.xlu0 %1217
    %v1219 = vsel %vm271, %v1216, 0
    %v1221 = vsel %vm271, %v1218, 0
    %1223 = vmatpush.xpose.msra.mxu0 0.0
    %1224 = vmatpush.xpose.msra.mxu0 0.0
    %1225 = vmatpush.xpose.msra.mxu0 0.0
    %1226 = vmatpush.xpose.msra.mxu0 0.0
    %1227 = vmatpush.xpose.msra.mxu0 0.0
    %1228 = vmatpush.xpose.msra.mxu0 0.0
    %1229 = vmatpush.xpose.msra.mxu0 0.0
    %1230 = vmatpush.xpose.msra.mxu0 0.0
    %1231 = vmatpush.xpose.msra.mxu0 0.0
    %1232 = vmatpush.xpose.msra.mxu0 0.0
    %1233 = vmatpush.xpose.msra.mxu0 0.0
    %1234 = vmatpush.xpose.msra.mxu0 0.0
    %1235 = vmatpush.xpose.msra.mxu0 0.0
    %1236 = vmatpush.xpose.msra.mxu0 0.0
    %1237 = vmatpush.xpose.msra.mxu0 0.0
    %1238 = vmatpush.xpose.msra.mxu0 %v1221
    %1239 = vmatmul.f32.gmra.mxu0 %v1219
    %v1240 = vpop.f32.mrf.mxu0
    %v1241 = vadd.f32 0.0, %v1240
    %1242 = vdwg.mxu0
    %v1243 = vmul.f32 %v1241, 0.25
    %v1244 = vsel %vm297, %v1243, -inf
    %1245 = vmax.xlane.f32.xlu0 %v1244
    %v1246 = vpop.xlane.xlu0 %1245
    %v1247 = vsub.f32 %v1243, %v1246
    %v1248 = vmul.f32 %v1247, 1.442695
    %v1249 = vpow.pop %v1248
    %v1250 = vsel %vm297, %v1249, 0.0
    %1251 = vadd.xlane.f32.xlu0 %v1250
    %v1252 = vpop.xlane.xlu0 %1251
    %v1253 = vrcp.pop %v1252
    %v1254 = vmul.f32 %v1249, %v1253
    %1255 = vrot.lane.b32.xlu0 %v935, 80
    %v1256 = vpop.permute.xlu0 %1255
    %v1258 = vsel %vm309, %v1254, 0
    %v1260 = vsel %vm159, %v1256, 0
    %1262 = vmatpush.msra.mxu0 0.0
    %1263 = vmatpush.msra.mxu0 0.0
    %1264 = vmatpush.msra.mxu0 0.0
    %1265 = vmatpush.msra.mxu0 0.0
    %1266 = vmatpush.msra.mxu0 0.0
    %1267 = vmatpush.msra.mxu0 0.0
    %1268 = vmatpush.msra.mxu0 0.0
    %1269 = vmatpush.msra.mxu0 0.0
    %1270 = vmatpush.msra.mxu0 0.0
    %1271 = vmatpush.msra.mxu0 0.0
    %1272 = vmatpush.msra.mxu0 0.0
    %1273 = vmatpush.msra.mxu0 0.0
    %1274 = vmatpush.msra.mxu0 0.0
    %1275 = vmatpush.msra.mxu0 0.0
    %1276 = vmatpush.msra.mxu0 0.0
    %1277 = vmatpush.msra.mxu0 %v1260
    %1278 = vmatmul.f32.gmra.mxu0 %v1258
    %v1279 = vpop.f32.mrf.mxu0
    %v1280 = vadd.f32 0.0, %v1279
    %1281 = vdwg.mxu0
    %v1283 = vsel %vm271, %v1280, 0
    %1285 = vmatpush.msra.mxu0 0.0
    %1286 = vmatpush.msra.mxu0 0.0
    %1287 = vmatpush.msra.mxu0 0.0
    %1288 = vmatpush.msra.mxu0 0.0
    %1289 = vmatpush.msra.mxu0 0.0
    %1290 = vmatpush.msra.mxu0 0.0
    %1291 = vmatpush.msra.mxu0 0.0
    %1292 = vmatpush.msra.mxu0 0.0
    %1293 = vmatpush.msra.mxu0 0.0
    %1294 = vmatpush.msra.mxu0 0.0
    %1295 = vmatpush.msra.mxu0 0.0
    %1296 = vmatpush.msra.mxu0 0.0
    %1297 = vmatpush.msra.mxu0 0.0
    %1298 = vmatpush.msra.mxu0 0.0
    %1299 = vmatpush.msra.mxu0 %v945
    %1300 = vmatpush.msra.mxu0 %v944
    %1301 = vmatmul.f32.gmra.mxu0 %v1283
    %v1302 = vpop.f32.mrf.mxu0
    %v1303 = vadd.f32 0.0, %v1302
    %1304 = vdwg.mxu0
    %v1305 = vadd.f32 %v1214, %v1303
    %v1306 = vadd.f32 %v827, %v1305
    %s1307 = scalar_lea.vmem %s10, 1
    %v1308 = vld [vmem:[%s1307] sm:$0x1]
    %v1310 = vperm.slane %v1308, 0
    %v1312 = vadd.f32 %v1306, %v1310
    %s1313 = scalar_lea.vmem %s11, 8
    %v1314 = vld [vmem:[%s1313] sm:$0x1f]
    %s1315 = scalar_lea.vmem %s12, 8
    %v1316 = vld [vmem:[%s1315] sm:$0x1f]
    %v1317 = vsel %vm155, %v1312, 0.0
    %1318 = vadd.xlane.f32.xlu0 %v1317
    %v1319 = vpop.xlane.xlu0 %1318
    %v1320 = vsel %vm159, %v1319, 0.0
    %v1321 = vrot.slane %v1320, 4
    %v1322 = vadd.f32 %v1320, %v1321
    %v1323 = vrot.slane %v1322, 2
    %v1324 = vadd.f32 %v1322, %v1323
    %v1325 = vrot.slane %v1324, 1
    %v1326 = vadd.f32 %v1324, %v1325
    %v1327 = vmul.f32 %v1326, 0.003125
    %v1328 = vsub.f32 %v1312, %v1327
    %v1329 = vmul.f32 %v1328, %v1328
    %v1330 = vsel %vm155, %v1329, 0.0
    %1331 = vadd.xlane.f32.xlu0 %v1330
    %v1332 = vpop.xlane.xlu0 %1331
    %v1333 = vsel %vm159, %v1332, 0.0
    %v1334 = vrot.slane %v1333, 4
    %v1335 = vadd.f32 %v1333, %v1334
    %v1336 = vrot.slane %v1335, 2
    %v1337 = vadd.f32 %v1335, %v1336
    %v1338 = vrot.slane %v1337, 1
    %v1339 = vadd.f32 %v1337, %v1338
    %v1340 = vmul.f32 %v1339, 0.003125
    %v1341 = vadd.f32 %v1340, 1e-05
    %v1342 = vrsqrt.pop %v1341
    %v1343 = vmul.f32 %v1342, %v1341
    %v1344 = vmul.f32 %v1343, %v1342
    %v1345 = vmul.f32 0.5, %v1344
    %v1346 = vsub.f32 1.5, %v1345
    %v1347 = vmul.f32 %v1342, %v1346
    %vm1348 = vweird.f32 %v1341
    %vm1349 = vweird.f32 %v1342
    %vm1350 = vmor %vm1348, %vm1349
    %v1351 = vsel %vm1350, %v1342, %v1347
    %v1352 = vmul.f32 %v1328, %v1351
    %v1353 = vmul.f32 %v1352, %v1314
    %v1354 = vadd.f32 %v1353, %v1316
    %s1355 = scalar_lea.vmem %s13, 64
    %v1356 = vld [vmem:[%s1355] sm:$0xff]
    %v1357 = vld [vmem:[%s1355 + $0x8] sm:$0xff]
    %v1358 = vld [vmem:[%s1355 + $0x10] sm:$0xff]
    %v1359 = vld [vmem:[%s1355 + $0x18] sm:$0xff]
    %v1360 = vld [vmem:[%s1355 + $0x20] sm:$0xff]
    %v1361 = vld [vmem:[%s1355 + $0x28] sm:$0xff]
    %v1362 = vld [vmem:[%s1355 + $0x30] sm:$0xff]
    %v1363 = vld [vmem:[%s1355 + $0x38] sm:$0xff]
    %s1364 = scalar_lea.vmem %s14, 1
    %v1365 = vld [vmem:[%s1364] sm:$0x1]
    %v1367 = vperm.slane %v1365, 0
    %v1370 = vsel %vm99, %v1354, 0
    %1372 = vmatpush.msra.mxu0 0.0
    %1373 = vmatpush.msra.mxu0 0.0
    %1374 = vmatpush.msra.mxu0 0.0
    %1375 = vmatpush.msra.mxu0 0.0
    %1376 = vmatpush.msra.mxu0 0.0
    %1377 = vmatpush.msra.mxu0 0.0
    %1378 = vmatpush.msra.mxu0 0.0
    %1379 = vmatpush.msra.mxu0 0.0
    %1380 = vmatpush.msra.mxu0 %v1363
    %1381 = vmatpush.msra.mxu0 %v1362
    %1382 = vmatpush.msra.mxu0 %v1361
    %1383 = vmatpush.msra.mxu0 %v1360
    %1384 = vmatpush.msra.mxu0 %v1359
    %1385 = vmatpush.msra.mxu0 %v1358
    %1386 = vmatpush.msra.mxu0 %v1357
    %1387 = vmatpush.msra.mxu0 %v1356
    %1388 = vmatmul.f32.gmra.mxu0 %v1370
    %v1389 = vpop.f32.mrf.mxu0
    %v1390 = vadd.f32 %v1367, %v1389
    %1391 = vdwg.mxu0
    %v1392 = vmul.f32 %v1390, 0.5
    %v1393 = vmul.f32 %v1390, 0.70710677
    %vm1394 = vcmp.lt.f32.partialorder %v1393, 0.0
    %v1395 = vsel %vm1394, -1.0, 1.0
    %v1396 = vand.u32 2147483647, %v1393
    %v1397 = vmul.f32 %v1396, 0.3275911
    %v1398 = vadd.f32 %v1397, 1.0
    %v1399 = vrcp.pop %v1398
    %v1400 = vmul.f32 %v1398, %v1399
    %v1401 = vsub.f32 1.0, %v1400
    %v1402 = vmul.f32 %v1399, %v1401
    %v1403 = vadd.f32 %v1399, %v1402
    %vm1404 = vweird.f32 %v1398
    %vm1405 = vweird.f32 %v1399
    %vm1406 = vmor %vm1404, %vm1405
    %v1407 = vsel %vm1406, %v1399, %v1403
    %v1408 = vand.u32 2147483647, %v1398
    %vm1409 = vcmp.eq.f32.partialorder %v1408, 8.507059e+37
    %v1410 = vand.u32 %v1398, 2147483648
    %v1411 = vor.u32 1.1754944e-38, %v1410
    %v1412 = vsel %vm1409, %v1411, %v1407
    %v1413 = vmul.f32 1.0, %v1412
    %v1414 = vmul.f32 %v1413, 1.0614054
    %v1415 = vadd.f32 %v1414, -1.4531521
    %v1416 = vmul.f32 %v1415, %v1413
    %v1417 = vadd.f32 %v1416, 1.4214138
    %v1418 = vmul.f32 %v1417, %v1413
    %v1419 = vadd.f32 %v1418, -0.28449672
    %v1420 = vmul.f32 %v1419, %v1413
    %v1421 = vadd.f32 %v1420, 0.2548296
    %v1422 = vmul.f32 %v1421, %v1413
    %v1423 = vsub.f32 0.0, %v1396
    %v1424 = vmul.f32 %v1423, %v1396
    %v1425 = vmul.f32 %v1424, 1.442695
    %v1426 = vpow.pop %v1425
    %v1427 = vmul.f32 %v1422, %v1426
    %v1428 = vsub.f32 1.0, %v1427
    %v1429 = vmul.f32 %v1395, %v1428
    %v1430 = vadd.f32 %v1429, 1.0
    %v1431 = vmul.f32 %v1392, %v1430
    %s1432 = scalar_lea.vmem %s15, 64
    %v1433 = vld [vmem:[%s1432] sm:$0xff]
    %v1434 = vld [vmem:[%s1432 + $0x8] sm:$0xff]
    %v1435 = vld [vmem:[%s1432 + $0x10] sm:$0xff]
    %v1436 = vld [vmem:[%s1432 + $0x18] sm:$0xff]
    %v1437 = vld [vmem:[%s1432 + $0x20] sm:$0xff]
    %v1438 = vld [vmem:[%s1432 + $0x28] sm:$0xff]
    %v1439 = vld [vmem:[%s1432 + $0x30] sm:$0xff]
    %v1440 = vld [vmem:[%s1432 + $0x38] sm:$0xff]
    %s1441 = scalar_lea.vmem %s16, 1
    %v1442 = vld [vmem:[%s1441] sm:$0x1]
    %v1444 = vperm.slane %v1442, 0
    %v1447 = vsel %vm99, %v1431, 0
    %1449 = vmatpush.msra.mxu0 0.0
    %1450 = vmatpush.msra.mxu0 0.0
    %1451 = vmatpush.msra.mxu0 0.0
    %1452 = vmatpush.msra.mxu0 0.0
    %1453 = vmatpush.msra.mxu0 0.0
    %1454 = vmatpush.msra.mxu0 0.0
    %1455 = vmatpush.msra.mxu0 0.0
    %1456 = vmatpush.msra.mxu0 0.0
    %1457 = vmatpush.msra.mxu0 %v1440
    %1458 = vmatpush.msra.mxu0 %v1439
    %1459 = vmatpush.msra.mxu0 %v1438
    %1460 = vmatpush.msra.mxu0 %v1437
    %1461 = vmatpush.msra.mxu0 %v1436
    %1462 = vmatpush.msra.mxu0 %v1435
    %1463 = vmatpush.msra.mxu0 %v1434
    %1464 = vmatpush.msra.mxu0 %v1433
    %1465 = vmatmul.f32.gmra.mxu0 %v1447
    %v1466 = vpop.f32.mrf.mxu0
    %v1467 = vadd.f32 %v1444, %v1466
    %1468 = vdwg.mxu0
    %v1469 = vmul.f32 %v1467, 0.5
    %v1470 = vmul.f32 %v1467, 0.70710677
    %vm1471 = vcmp.lt.f32.partialorder %v1470, 0.0
    %v1472 = vsel %vm1471, -1.0, 1.0
    %v1473 = vand.u32 2147483647, %v1470
    %v1474 = vmul.f32 %v1473, 0.3275911
    %v1475 = vadd.f32 %v1474, 1.0
    %v1476 = vrcp.pop %v1475
    %v1477 = vmul.f32 %v1475, %v1476
    %v1478 = vsub.f32 1.0, %v1477
    %v1479 = vmul.f32 %v1476, %v1478
    %v1480 = vadd.f32 %v1476, %v1479
    %vm1481 = vweird.f32 %v1475
    %vm1482 = vweird.f32 %v1476
    %vm1483 = vmor %vm1481, %vm1482
    %v1484 = vsel %vm1483, %v1476, %v1480
    %v1485 = vand.u32 2147483647, %v1475
    %vm1486 = vcmp.eq.f32.partialorder %v1485, 8.507059e+37
    %v1487 = vand.u32 %v1475, 2147483648
    %v1488 = vor.u32 1.1754944e-38, %v1487
    %v1489 = vsel %vm1486, %v1488, %v1484
    %v1490 = vmul.f32 1.0, %v1489
    %v1491 = vmul.f32 %v1490, 1.0614054
    %v1492 = vadd.f32 %v1491, -1.4531521
    %v1493 = vmul.f32 %v1492, %v1490
    %v1494 = vadd.f32 %v1493, 1.4214138
    %v1495 = vmul.f32 %v1494, %v1490
    %v1496 = vadd.f32 %v1495, -0.28449672
    %v1497 = vmul.f32 %v1496, %v1490
    %v1498 = vadd.f32 %v1497, 0.2548296
    %v1499 = vmul.f32 %v1498, %v1490
    %v1500 = vsub.f32 0.0, %v1473
    %v1501 = vmul.f32 %v1500, %v1473
    %v1502 = vmul.f32 %v1501, 1.442695
    %v1503 = vpow.pop %v1502
    %v1504 = vmul.f32 %v1499, %v1503
    %v1505 = vsub.f32 1.0, %v1504
    %v1506 = vmul.f32 %v1472, %v1505
    %v1507 = vadd.f32 %v1506, 1.0
    %v1508 = vmul.f32 %v1469, %v1507
    %v1509 = vadd.f32 %v1312, %v1508
    %v1510 = vld [vmem:[%s17] sm:$0x1f]
    %v1511 = vld [vmem:[%s18] sm:$0x1f]
    %v1512 = vsel %vm155, %v1509, 0.0
    %1513 = vadd.xlane.f32.xlu0 %v1512
    %v1514 = vpop.xlane.xlu0 %1513
    %v1515 = vsel %vm159, %v1514, 0.0
    %v1516 = vrot.slane %v1515, 4
    %v1517 = vadd.f32 %v1515, %v1516
    %v1518 = vrot.slane %v1517, 2
    %v1519 = vadd.f32 %v1517, %v1518
    %v1520 = vrot.slane %v1519, 1
    %v1521 = vadd.f32 %v1519, %v1520
    %v1522 = vmul.f32 %v1521, 0.003125
    %v1523 = vsub.f32 %v1509, %v1522
    %v1524 = vmul.f32 %v1523, %v1523
    %v1525 = vsel %vm155, %v1524, 0.0
    %1526 = vadd.xlane.f32.xlu0 %v1525
    %v1527 = vpop.xlane.xlu0 %1526
    %v1528 = vsel %vm159, %v1527, 0.0
    %v1529 = vrot.slane %v1528, 4
    %v1530 = vadd.f32 %v1528, %v1529
    %v1531 = vrot.slane %v1530, 2
    %v1532 = vadd.f32 %v1530, %v1531
    %v1533 = vrot.slane %v1532, 1
    %v1534 = vadd.f32 %v1532, %v1533
    %v1535 = vmul.f32 %v1534, 0.003125
    %v1536 = vadd.f32 %v1535, 1e-05
    %v1537 = vrsqrt.pop %v1536
    %v1538 = vmul.f32 %v1537, %v1536
    %v1539 = vmul.f32 %v1538, %v1537
    %v1540 = vmul.f32 0.5, %v1539
    %v1541 = vsub.f32 1.5, %v1540
    %v1542 = vmul.f32 %v1537, %v1541
    %vm1543 = vweird.f32 %v1536
    %vm1544 = vweird.f32 %v1537
    %vm1545 = vmor %vm1543, %vm1544
    %v1546 = vsel %vm1545, %v1537, %v1542
    %v1547 = vmul.f32 %v1523, %v1546
    %v1548 = vmul.f32 %v1547, %v1510
    %v1549 = vadd.f32 %v1548, %v1511
    %v1550 = vld [vmem:[%s19] sm:$0xff]
    %v1551 = vld [vmem:[%s19 + $0x8] sm:$0xff]
    %v1552 = vld [vmem:[%s19 + $0x10] sm:$0xff]
    %v1553 = vld [vmem:[%s19 + $0x18] sm:$0xff]
    %v1554 = vld [vmem:[%s19 + $0x20] sm:$0xff]
    %v1555 = vld [vmem:[%s19 + $0x28] sm:$0xff]
    %v1556 = vld [vmem:[%s19 + $0x30] sm:$0xff]
    %v1557 = vld [vmem:[%s19 + $0x38] sm:$0xff]
    %v1558 = vld [vmem:[%s20] sm:$0x1]
    %v1560 = vsel %vm99, %v1549, 0
    %1562 = vmatpush.msra.mxu0 0.0
    %1563 = vmatpush.msra.mxu0 0.0
    %1564 = vmatpush.msra.mxu0 0.0
    %1565 = vmatpush.msra.mxu0 0.0
    %1566 = vmatpush.msra.mxu0 0.0
    %1567 = vmatpush.msra.mxu0 0.0
    %1568 = vmatpush.msra.mxu0 0.0
    %1569 = vmatpush.msra.mxu0 0.0
    %1570 = vmatpush.msra.mxu0 %v1557
    %1571 = vmatpush.msra.mxu0 %v1556
    %1572 = vmatpush.msra.mxu0 %v1555
    %1573 = vmatpush.msra.mxu0 %v1554
    %1574 = vmatpush.msra.mxu0 %v1553
    %1575 = vmatpush.msra.mxu0 %v1552
    %1576 = vmatpush.msra.mxu0 %v1551
    %1577 = vmatpush.msra.mxu0 %v1550
    %1578 = vmatmul.f32.gmra.mxu0 %v1560
    %v1579 = vpop.f32.mrf.mxu0
    %v1580 = vadd.f32 %v1558, %v1579
    %1581 = vdwg.mxu0
    %vm1582 = vcmask 73728
    %v1583 = vsel %vm1582, %v1580, -inf
    %1584 = vmax.xlane.f32.xlu0 %v1583
    %v1585 = vpop.xlane.xlu0 %1584
    %v1586 = vsub.f32 %v1580, %v1585
    %v1587 = vmul.f32 %v1586, 1.442695
    %v1588 = vpow.pop %v1587
    %v1589 = vsel %vm1582, %v1588, 0.0
    %1590 = vadd.xlane.f32.xlu0 %v1589
    %v1591 = vpop.xlane.xlu0 %1590
    %v1592 = vrcp.pop %v1591
    %v1593 = vmul.f32 %v1591, %v1592
    %v1594 = vsub.f32 1.0, %v1593
    %v1595 = vmul.f32 %v1592, %v1594
    %v1596 = vadd.f32 %v1592, %v1595
    %vm1597 = vweird.f32 %v1591
    %vm1598 = vweird.f32 %v1592
    %vm1599 = vmor %vm1597, %vm1598
    %v1600 = vsel %vm1599, %v1592, %v1596
    %v1601 = vand.u32 2147483647, %v1591
    %vm1602 = vcmp.eq.f32.partialorder %v1601, 8.507059e+37
    %v1603 = vand.u32 %v1591, 2147483648
    %v1604 = vor.u32 1.1754944e-38, %v1603
    %v1605 = vsel %vm1602, %v1604, %v1600
    %v1606 = vmul.f32 %v1588, %v1605
    %1607 = vst.msk [vmem:[#allocation2] sm:$0x1] %vm1582, %v1606
    // Predicated region
    $region86: #{vision_transformer.1} parent=1 // pred_check
      _
    $region87: #{vision_transformer.1} parent=1 // pred_check_branch
      %1609 = sbr.rel (0) target = $region89
    $region88: #{vision_transformer.1} parent=1 // pred_region
      %1611 = vsyncadd [#allocation3], 0
      %s1613 = sshll.u32 [#allocation2], 4
      %s1614 = int_to_ptr.vmem [resolvable:$true] %s1613
      %s1615 = sshll.u32 %s21, 4
      %s1616 = int_to_ptr.hbm [resolvable:$true] %s1615
      %1618 = dma.vmem_to_hbm [thread:$0]  %s1614, 16, %s1616, [#allocation3]
    $region89: #{vision_transformer.1} parent=1 // pred_fallthru
      _
    // Predicated region
    $region90: #{vision_transformer.1} parent=1 // pred_check
      _
    $region91: #{vision_transformer.1} parent=1 // pred_check_branch
      %1620 = sbr.rel (0) target = $region93
    $region92: #{vision_transformer.1} parent=1 // pred_region
      %1622 = dma.done [#allocation3], 16
    $region93: #{vision_transformer.1} parent=1 // pred_fallthru
      _
    %1623 = vsyncpa [#allocation3], 1

</llo_original>
